<compile_context>
chip_gen: v5e
topology: v5e:2x2
jax: 0.10.0
libtpu: 0.0.40
codegen_flags: <defaults>
</compile_context>

<pallas_src>
import jax
import jax.numpy as jnp
import numpy as np
from jax.experimental import pallas as pl
from jax.experimental.pallas import tpu as pltpu


# ------------------------- in-kernel helpers -------------------------

def _gj_inverse(a):
    """Unrolled Gauss-Jordan inverse of a small SPD (k, k) matrix.

    The Gram matrix V_t @ V_t^T is SPD, so no pivoting is required (leading
    pivots stay positive).  Every step is a handful of VPU ops on a (k, k)
    tile; k is static (16), so the loop fully unrolls at trace time.
    """
    k = a.shape[0]
    inv_ = jnp.eye(k, dtype=a.dtype)
    row_ids = jax.lax.broadcasted_iota(jnp.int32, (k, k), 0)
    for i in range(k):
        piv = a[i:i + 1, i:i + 1]                     # (1, 1)
        prow_a = a[i:i + 1, :] / piv                  # (1, k)
        prow_i = inv_[i:i + 1, :] / piv               # (1, k)
        col = a[:, i:i + 1]                           # (k, 1)
        on_pivot_row = row_ids == i
        a = jnp.where(on_pivot_row, prow_a, a - col * prow_a)
        inv_ = jnp.where(on_pivot_row, prow_i, inv_ - col * prow_i)
    return inv_


# ------------------------- fused Pallas kernel -------------------------

def _subspace_kernel(x_ref, w0_ref, b0_ref, w1_ref, b1_ref, w2_ref, b2_ref,
                     o_ref):
    """Fused Subspace forward for one batch element in (channels, HW) layout.

    x_ref : (C, HW)      o_ref : (C, HW)
    w*    : (out, in)    b*    : (out, 1)   (Conv2d 1x1 bias + eval BN folded)
    """
    f32 = jnp.float32
    x = x_ref[...]                                    # (C, HW)
    c_in = x.shape[0]

    def lrelu(z):                                     # nn.LeakyReLU() default slope
        return jnp.where(z >= 0, z, 0.01 * z)

    # conv0 + bn0: contraction depth is only C (=4), so do it as C broadcast
    # multiply-adds on the VPU instead of a nearly-empty MXU pass.
    w0 = w0_ref[...]                                  # (k, C)
    z0 = w0[:, 0:1] * x[0:1, :]
    for c in range(1, c_in):
        z0 = z0 + w0[:, c:c + 1] * x[c:c + 1, :]
    r = lrelu(z0 + b0_ref[...])                       # (k, HW)

    # conv1 + bn1 (+ LeakyReLU) and conv2 + bn2 (+ residual) on the MXU.
    h = lrelu(jnp.dot(w1_ref[...], r, preferred_element_type=f32) + b1_ref[...])
    s = r + jnp.dot(w2_ref[...], h, preferred_element_type=f32) + b2_ref[...]

    # L1-normalized basis V_t (k, HW): reduction over the lane (HW) axis.
    v_t = s / (1e-6 + jnp.sum(jnp.abs(s), axis=1, keepdims=True))

    # Gram matrix V_t @ V_t^T: contract the lane axis of both operands
    # (MXU-friendly, no operand transpose).
    mat = jax.lax.dot_general(v_t, v_t, (((1,), (1,)), ((), ())),
                              preferred_element_type=f32)            # (k, k)
    # TODO(synk): torch.inverse has no Pallas primitive; implemented here as an
    # unrolled in-register Gauss-Jordan (valid: the Gram matrix is SPD).
    mat_inv = _gj_inverse(mat)                                        # (k, k)

    # project_feature^T = (X @ V_t^T) @ mat_inv^T ;  output = pf^T @ V_t
    t_ck = jax.lax.dot_general(x, v_t, (((1,), (1,)), ((), ())),
                               preferred_element_type=f32)            # (C, k)
    pf_ck = jax.lax.dot_general(t_ck, mat_inv, (((1,), (1,)), ((), ())),
                                preferred_element_type=f32)           # (C, k)
    o_ref[...] = jnp.dot(pf_ck, v_t, preferred_element_type=f32)      # (C, HW)


# ------------------------- wrapper -------------------------

def subspace_forward(x_nchw, params):
    B, C, H, W = x_nchw.shape
    HW = H * W
    x_flat = x_nchw.reshape(B, C, HW)      # NCHW is already channels-major

    def wspec(arr):                        # full-array block, resident in VMEM
        return pl.BlockSpec(arr.shape, lambda b: (0,) * arr.ndim)

    out_flat = pl.pallas_call(
        _subspace_kernel,
        out_shape=jax.ShapeDtypeStruct((B, C, HW), jnp.float32),
        grid=(B,),
        in_specs=[pl.BlockSpec((None, C, HW), lambda b: (b, 0, 0)),
                  wspec(params["w0"]), wspec(params["b0"]),
                  wspec(params["w1"]), wspec(params["b1"]),
                  wspec(params["w2"]), wspec(params["b2"])],
        out_specs=pl.BlockSpec((None, C, HW), lambda b: (b, 0, 0)),
        compiler_params=pltpu.CompilerParams(
            dimension_semantics=("parallel",)),   # one batch element per TC on v7x
    )(x_flat, params["w0"], params["b0"], params["w1"], params["b1"],
      params["w2"], params["b2"])
    # NOTE: for large H*W, add an HW grid axis ("arbitrary") with scratch
    # accumulators for the L1/Gram reductions (needed for v7x's 64 MiB VMEM).
    return out_flat.reshape(B, C, H, W)


# ------------------------- parameter setup (glue) -------------------------

def init_params(key, ch_in, k):
    """Deterministic synthetic params. Conv2d(1x1, bias) + eval-mode BatchNorm2d
    folded into a single (W_eff (out,in), b_eff (out,1)) per layer."""
    keys = jax.random.split(key, 18)

    def conv_bn(ks, cin, cout):
        kw, kb, kg, kbe, km, kv = ks
        w = 0.5 * jax.random.normal(kw, (cout, cin), jnp.float32)
        b = 0.1 * jax.random.normal(kb, (cout,), jnp.float32)
        gamma = 1.0 + 0.1 * jax.random.normal(kg, (cout,), jnp.float32)
        beta = 0.1 * jax.random.normal(kbe, (cout,), jnp.float32)
        mean = 0.1 * jax.random.normal(km, (cout,), jnp.float32)
        var = 0.5 + jnp.abs(jax.random.normal(kv, (cout,), jnp.float32))
        scale = gamma / jnp.sqrt(var + 1e-5)          # BatchNorm2d eps
        w_eff = w * scale[:, None]
        b_eff = (b - mean) * scale + beta
        return w_eff, b_eff.reshape(cout, 1)

    w0, b0 = conv_bn(keys[0:6], ch_in, k)
    w1, b1 = conv_bn(keys[6:12], k, k)
    w2, b2 = conv_bn(keys[12:18], k, k)
    return {"w0": w0, "b0": b0, "w1": w1, "b1": b1, "w2": w2, "b2": b2}


# ------------------------- pure-JAX reference -------------------------

def ref_forward(x_nchw, params):
    B, C, H, W = x_nchw.shape
    HW = H * W
    xf = x_nchw.reshape(B, C, HW)                                   # (B, C, HW)

    def lrelu(z):
        return jnp.where(z >= 0, z, 0.01 * z)

    r = lrelu(jnp.einsum('oc,bcp->bop', params["w0"], xf) + params["b0"][None])
    h = lrelu(jnp.einsum('oc,bcp->bop', params["w1"], r) + params["b1"][None])
    s = r + jnp.einsum('oc,bcp->bop', params["w2"], h) + params["b2"][None]

    V_t = s / (1e-6 + jnp.sum(jnp.abs(s), axis=2, keepdims=True))   # (B, k, HW)
    V = jnp.transpose(V_t, (0, 2, 1))
    mat = V_t @ V
    mat_inv = jnp.linalg.inv(mat)
    project_mat = mat_inv @ V_t                                     # (B, k, HW)
    project_feature = project_mat @ jnp.transpose(xf, (0, 2, 1))    # (B, k, C)
    out = jnp.transpose(V @ project_feature, (0, 2, 1)).reshape(B, C, H, W)
    return out


if __name__ == "__main__":
    key = jax.random.PRNGKey(0)
    kx, kp = jax.random.split(key)

    B, CH_IN, H, W, K = 2, 4, 16, 16, 16
    x = jax.random.normal(kx, (B, CH_IN, H, W), jnp.float32)        # NCHW like PyTorch
    params = init_params(kp, CH_IN, K)

    out = jax.block_until_ready(subspace_forward(x, params))
    ref = jax.block_until_ready(ref_forward(x, params))

    assert out.shape == (B, CH_IN, H, W)
    np.testing.assert_allclose(np.asarray(out), np.asarray(ref), rtol=2e-3, atol=2e-3)
    print("KERNEL_OK")
</pallas_src>

<mosaic_0001>
module attributes {stable_mosaic.version = 11 : i64} {
  func.func @_subspace_kernel(%arg0: i32, %arg1: memref<1x4x256xf32, #tpu.memory_space<vmem>>, %arg2: memref<16x4xf32, #tpu.memory_space<vmem>>, %arg3: memref<16x1xf32, #tpu.memory_space<vmem>>, %arg4: memref<16x16xf32, #tpu.memory_space<vmem>>, %arg5: memref<16x1xf32, #tpu.memory_space<vmem>>, %arg6: memref<16x16xf32, #tpu.memory_space<vmem>>, %arg7: memref<16x1xf32, #tpu.memory_space<vmem>>, %arg8: memref<1x4x256xf32, #tpu.memory_space<vmem>>) attributes {dimension_semantics = [#tpu.dimension_semantics<parallel>], iteration_bounds = array<i64: 2>, scalar_prefetch = 0 : i64, scratch_operands = 0 : i64, tpu.core_type = #tpu.core_type<tc>, window_params = [{transform_indices = @transform_0, window_bounds = array<i64: 1, 4, 256>}, {pipeline_mode = #tpu.pipeline_mode<synchronous>, transform_indices = @transform_1, window_bounds = array<i64: 16, 4>}, {pipeline_mode = #tpu.pipeline_mode<synchronous>, transform_indices = @transform_2, window_bounds = array<i64: 16, 1>}, {pipeline_mode = #tpu.pipeline_mode<synchronous>, transform_indices = @transform_3, window_bounds = array<i64: 16, 16>}, {pipeline_mode = #tpu.pipeline_mode<synchronous>, transform_indices = @transform_4, window_bounds = array<i64: 16, 1>}, {pipeline_mode = #tpu.pipeline_mode<synchronous>, transform_indices = @transform_5, window_bounds = array<i64: 16, 16>}, {pipeline_mode = #tpu.pipeline_mode<synchronous>, transform_indices = @transform_6, window_bounds = array<i64: 16, 1>}, {transform_indices = @transform_7, window_bounds = array<i64: 1, 4, 256>}]} {
    %c0 = arith.constant 0 : index
    %c0_0 = arith.constant 0 : index
    %c0_1 = arith.constant 0 : index
    %0 = vector.load %arg1[%c0, %c0_0, %c0_1] : memref<1x4x256xf32, #tpu.memory_space<vmem>>, vector<1x4x256xf32>
    %1 = vector.shape_cast %0 : vector<1x4x256xf32> to vector<4x256xf32>
    %c0_2 = arith.constant 0 : index
    %c0_3 = arith.constant 0 : index
    %2 = vector.load %arg2[%c0_2, %c0_3] : memref<16x4xf32, #tpu.memory_space<vmem>>, vector<16x4xf32>
    %3 = vector.extract_strided_slice %2 {offsets = [0, 0], sizes = [16, 1], strides = [1, 1]} : vector<16x4xf32> to vector<16x1xf32>
    %4 = vector.extract_strided_slice %1 {offsets = [0, 0], sizes = [1, 256], strides = [1, 1]} : vector<4x256xf32> to vector<1x256xf32>
    %5 = vector.broadcast %3 : vector<16x1xf32> to vector<16x256xf32>
    %6 = vector.broadcast %4 : vector<1x256xf32> to vector<16x256xf32>
    %7 = arith.mulf %5, %6 : vector<16x256xf32>
    %8 = vector.extract_strided_slice %2 {offsets = [0, 1], sizes = [16, 1], strides = [1, 1]} : vector<16x4xf32> to vector<16x1xf32>
    %9 = vector.extract_strided_slice %1 {offsets = [1, 0], sizes = [1, 256], strides = [1, 1]} : vector<4x256xf32> to vector<1x256xf32>
    %10 = vector.broadcast %8 : vector<16x1xf32> to vector<16x256xf32>
    %11 = vector.broadcast %9 : vector<1x256xf32> to vector<16x256xf32>
    %12 = arith.mulf %10, %11 : vector<16x256xf32>
    %13 = arith.addf %7, %12 : vector<16x256xf32>
    %14 = vector.extract_strided_slice %2 {offsets = [0, 2], sizes = [16, 1], strides = [1, 1]} : vector<16x4xf32> to vector<16x1xf32>
    %15 = vector.extract_strided_slice %1 {offsets = [2, 0], sizes = [1, 256], strides = [1, 1]} : vector<4x256xf32> to vector<1x256xf32>
    %16 = vector.broadcast %14 : vector<16x1xf32> to vector<16x256xf32>
    %17 = vector.broadcast %15 : vector<1x256xf32> to vector<16x256xf32>
    %18 = arith.mulf %16, %17 : vector<16x256xf32>
    %19 = arith.addf %13, %18 : vector<16x256xf32>
    %20 = vector.extract_strided_slice %2 {offsets = [0, 3], sizes = [16, 1], strides = [1, 1]} : vector<16x4xf32> to vector<16x1xf32>
    %21 = vector.extract_strided_slice %1 {offsets = [3, 0], sizes = [1, 256], strides = [1, 1]} : vector<4x256xf32> to vector<1x256xf32>
    %22 = vector.broadcast %20 : vector<16x1xf32> to vector<16x256xf32>
    %23 = vector.broadcast %21 : vector<1x256xf32> to vector<16x256xf32>
    %24 = arith.mulf %22, %23 : vector<16x256xf32>
    %25 = arith.addf %19, %24 : vector<16x256xf32>
    %c0_4 = arith.constant 0 : index
    %c0_5 = arith.constant 0 : index
    %26 = vector.load %arg3[%c0_4, %c0_5] : memref<16x1xf32, #tpu.memory_space<vmem>>, vector<16x1xf32>
    %27 = vector.broadcast %26 : vector<16x1xf32> to vector<16x256xf32>
    %28 = arith.addf %25, %27 : vector<16x256xf32>
    %cst = arith.constant 0.000000e+00 : f32
    %29 = vector.broadcast %cst : f32 to vector<16x256xf32>
    %30 = arith.cmpf oge, %28, %29 : vector<16x256xf32>
    %cst_6 = arith.constant 0.00999999977 : f32
    %31 = vector.broadcast %cst_6 : f32 to vector<16x256xf32>
    %32 = arith.mulf %31, %28 : vector<16x256xf32>
    %33 = arith.select %30, %28, %32 : vector<16x256xi1>, vector<16x256xf32>
    %c0_7 = arith.constant 0 : index
    %c0_8 = arith.constant 0 : index
    %34 = vector.load %arg4[%c0_7, %c0_8] : memref<16x16xf32, #tpu.memory_space<vmem>>, vector<16x16xf32>
    %cst_9 = arith.constant dense<0.000000e+00> : vector<16x256xf32>
    %35 = tpu.matmul %34, %33, %cst_9 {dimension_numbers = #tpu.dot_dimension_numbers<[1], [0], [0], [1], [0, 0, 1, 1], [], []>} : vector<16x16xf32>, vector<16x256xf32>, vector<16x256xf32> -> vector<16x256xf32>
    %c0_10 = arith.constant 0 : index
    %c0_11 = arith.constant 0 : index
    %36 = vector.load %arg5[%c0_10, %c0_11] : memref<16x1xf32, #tpu.memory_space<vmem>>, vector<16x1xf32>
    %37 = vector.broadcast %36 : vector<16x1xf32> to vector<16x256xf32>
    %38 = arith.addf %35, %37 : vector<16x256xf32>
    %cst_12 = arith.constant 0.000000e+00 : f32
    %39 = vector.broadcast %cst_12 : f32 to vector<16x256xf32>
    %40 = arith.cmpf oge, %38, %39 : vector<16x256xf32>
    %cst_13 = arith.constant 0.00999999977 : f32
    %41 = vector.broadcast %cst_13 : f32 to vector<16x256xf32>
    %42 = arith.mulf %41, %38 : vector<16x256xf32>
    %43 = arith.select %40, %38, %42 : vector<16x256xi1>, vector<16x256xf32>
    %c0_14 = arith.constant 0 : index
    %c0_15 = arith.constant 0 : index
    %44 = vector.load %arg6[%c0_14, %c0_15] : memref<16x16xf32, #tpu.memory_space<vmem>>, vector<16x16xf32>
    %cst_16 = arith.constant dense<0.000000e+00> : vector<16x256xf32>
    %45 = tpu.matmul %44, %43, %cst_16 {dimension_numbers = #tpu.dot_dimension_numbers<[1], [0], [0], [1], [0, 0, 1, 1], [], []>} : vector<16x16xf32>, vector<16x256xf32>, vector<16x256xf32> -> vector<16x256xf32>
    %46 = arith.addf %33, %45 : vector<16x256xf32>
    %c0_17 = arith.constant 0 : index
    %c0_18 = arith.constant 0 : index
    %47 = vector.load %arg7[%c0_17, %c0_18] : memref<16x1xf32, #tpu.memory_space<vmem>>, vector<16x1xf32>
    %48 = vector.broadcast %47 : vector<16x1xf32> to vector<16x256xf32>
    %49 = arith.addf %46, %48 : vector<16x256xf32>
    %50 = math.absf %49 : vector<16x256xf32>
    %cst_19 = arith.constant dense<0.000000e+00> : vector<16xf32>
    %51 = vector.multi_reduction <add>, %50, %cst_19 [1] : vector<16x256xf32> to vector<16xf32>
    %52 = vector.shape_cast %51 : vector<16xf32> to vector<16x1xf32>
    %cst_20 = arith.constant 9.99999997E-7 : f32
    %53 = vector.broadcast %cst_20 : f32 to vector<16x1xf32>
    %54 = arith.addf %53, %52 : vector<16x1xf32>
    %55 = vector.broadcast %54 : vector<16x1xf32> to vector<16x256xf32>
    %56 = arith.divf %49, %55 : vector<16x256xf32>
    %cst_21 = arith.constant dense<0.000000e+00> : vector<16x16xf32>
    %57 = tpu.matmul %56, %56, %cst_21 {dimension_numbers = #tpu.dot_dimension_numbers<[1], [1], [0], [0], [0, 0, 1, 0], [], []>} : vector<16x256xf32>, vector<16x256xf32>, vector<16x16xf32> -> vector<16x16xf32>
    %58 = tpu.iota {dimensions = array<i32: 0>} : vector<16x16xi32>
    %59 = tpu.iota {dimensions = array<i32: 1>} : vector<16x16xi32>
    %c0_i32 = arith.constant 0 : i32
    %60 = vector.broadcast %c0_i32 : i32 to vector<16x16xi32>
    %61 = arith.addi %58, %60 : vector<16x16xi32>
    %62 = arith.cmpi eq, %61, %59 : vector<16x16xi32>
    %63 = arith.extui %62 : vector<16x16xi1> to vector<16x16xi32>
    %64 = arith.sitofp %63 : vector<16x16xi32> to vector<16x16xf32>
    %65 = tpu.iota {dimensions = array<i32: 0>} : vector<16x16xi32>
    %66 = vector.extract_strided_slice %57 {offsets = [0, 0], sizes = [1, 1], strides = [1, 1]} : vector<16x16xf32> to vector<1x1xf32>
    %67 = vector.extract_strided_slice %57 {offsets = [0, 0], sizes = [1, 16], strides = [1, 1]} : vector<16x16xf32> to vector<1x16xf32>
    %68 = vector.broadcast %66 : vector<1x1xf32> to vector<1x16xf32>
    %69 = arith.divf %67, %68 : vector<1x16xf32>
    %70 = vector.extract_strided_slice %64 {offsets = [0, 0], sizes = [1, 16], strides = [1, 1]} : vector<16x16xf32> to vector<1x16xf32>
    %71 = vector.broadcast %66 : vector<1x1xf32> to vector<1x16xf32>
    %72 = arith.divf %70, %71 : vector<1x16xf32>
    %73 = vector.extract_strided_slice %57 {offsets = [0, 0], sizes = [16, 1], strides = [1, 1]} : vector<16x16xf32> to vector<16x1xf32>
    %c0_i32_22 = arith.constant 0 : i32
    %74 = vector.broadcast %c0_i32_22 : i32 to vector<16x16xi32>
    %75 = arith.cmpi eq, %65, %74 : vector<16x16xi32>
    %76 = vector.broadcast %73 : vector<16x1xf32> to vector<16x16xf32>
    %77 = vector.broadcast %69 : vector<1x16xf32> to vector<16x16xf32>
    %78 = arith.mulf %76, %77 : vector<16x16xf32>
    %79 = arith.subf %57, %78 : vector<16x16xf32>
    %80 = vector.shape_cast %69 : vector<1x16xf32> to vector<1x16xf32>
    %81 = vector.broadcast %80 : vector<1x16xf32> to vector<16x16xf32>
    %82 = arith.select %75, %81, %79 : vector<16x16xi1>, vector<16x16xf32>
    %83 = vector.broadcast %73 : vector<16x1xf32> to vector<16x16xf32>
    %84 = vector.broadcast %72 : vector<1x16xf32> to vector<16x16xf32>
    %85 = arith.mulf %83, %84 : vector<16x16xf32>
    %86 = arith.subf %64, %85 : vector<16x16xf32>
    %87 = vector.shape_cast %72 : vector<1x16xf32> to vector<1x16xf32>
    %88 = vector.broadcast %87 : vector<1x16xf32> to vector<16x16xf32>
    %89 = arith.select %75, %88, %86 : vector<16x16xi1>, vector<16x16xf32>
    %90 = vector.extract_strided_slice %82 {offsets = [1, 1], sizes = [1, 1], strides = [1, 1]} : vector<16x16xf32> to vector<1x1xf32>
    %91 = vector.extract_strided_slice %82 {offsets = [1, 0], sizes = [1, 16], strides = [1, 1]} : vector<16x16xf32> to vector<1x16xf32>
    %92 = vector.broadcast %90 : vector<1x1xf32> to vector<1x16xf32>
    %93 = arith.divf %91, %92 : vector<1x16xf32>
    %94 = vector.extract_strided_slice %89 {offsets = [1, 0], sizes = [1, 16], strides = [1, 1]} : vector<16x16xf32> to vector<1x16xf32>
    %95 = vector.broadcast %90 : vector<1x1xf32> to vector<1x16xf32>
    %96 = arith.divf %94, %95 : vector<1x16xf32>
    %97 = vector.extract_strided_slice %82 {offsets = [0, 1], sizes = [16, 1], strides = [1, 1]} : vector<16x16xf32> to vector<16x1xf32>
    %c1_i32 = arith.constant 1 : i32
    %98 = vector.broadcast %c1_i32 : i32 to vector<16x16xi32>
    %99 = arith.cmpi eq, %65, %98 : vector<16x16xi32>
    %100 = vector.broadcast %97 : vector<16x1xf32> to vector<16x16xf32>
    %101 = vector.broadcast %93 : vector<1x16xf32> to vector<16x16xf32>
    %102 = arith.mulf %100, %101 : vector<16x16xf32>
    %103 = arith.subf %82, %102 : vector<16x16xf32>
    %104 = vector.shape_cast %93 : vector<1x16xf32> to vector<1x16xf32>
    %105 = vector.broadcast %104 : vector<1x16xf32> to vector<16x16xf32>
    %106 = arith.select %99, %105, %103 : vector<16x16xi1>, vector<16x16xf32>
    %107 = vector.broadcast %97 : vector<16x1xf32> to vector<16x16xf32>
    %108 = vector.broadcast %96 : vector<1x16xf32> to vector<16x16xf32>
    %109 = arith.mulf %107, %108 : vector<16x16xf32>
    %110 = arith.subf %89, %109 : vector<16x16xf32>
    %111 = vector.shape_cast %96 : vector<1x16xf32> to vector<1x16xf32>
    %112 = vector.broadcast %111 : vector<1x16xf32> to vector<16x16xf32>
    %113 = arith.select %99, %112, %110 : vector<16x16xi1>, vector<16x16xf32>
    %114 = vector.extract_strided_slice %106 {offsets = [2, 2], sizes = [1, 1], strides = [1, 1]} : vector<16x16xf32> to vector<1x1xf32>
    %115 = vector.extract_strided_slice %106 {offsets = [2, 0], sizes = [1, 16], strides = [1, 1]} : vector<16x16xf32> to vector<1x16xf32>
    %116 = vector.broadcast %114 : vector<1x1xf32> to vector<1x16xf32>
    %117 = arith.divf %115, %116 : vector<1x16xf32>
    %118 = vector.extract_strided_slice %113 {offsets = [2, 0], sizes = [1, 16], strides = [1, 1]} : vector<16x16xf32> to vector<1x16xf32>
    %119 = vector.broadcast %114 : vector<1x1xf32> to vector<1x16xf32>
    %120 = arith.divf %118, %119 : vector<1x16xf32>
    %121 = vector.extract_strided_slice %106 {offsets = [0, 2], sizes = [16, 1], strides = [1, 1]} : vector<16x16xf32> to vector<16x1xf32>
    %c2_i32 = arith.constant 2 : i32
    %122 = vector.broadcast %c2_i32 : i32 to vector<16x16xi32>
    %123 = arith.cmpi eq, %65, %122 : vector<16x16xi32>
    %124 = vector.broadcast %121 : vector<16x1xf32> to vector<16x16xf32>
    %125 = vector.broadcast %117 : vector<1x16xf32> to vector<16x16xf32>
    %126 = arith.mulf %124, %125 : vector<16x16xf32>
    %127 = arith.subf %106, %126 : vector<16x16xf32>
    %128 = vector.shape_cast %117 : vector<1x16xf32> to vector<1x16xf32>
    %129 = vector.broadcast %128 : vector<1x16xf32> to vector<16x16xf32>
    %130 = arith.select %123, %129, %127 : vector<16x16xi1>, vector<16x16xf32>
    %131 = vector.broadcast %121 : vector<16x1xf32> to vector<16x16xf32>
    %132 = vector.broadcast %120 : vector<1x16xf32> to vector<16x16xf32>
    %133 = arith.mulf %131, %132 : vector<16x16xf32>
    %134 = arith.subf %113, %133 : vector<16x16xf32>
    %135 = vector.shape_cast %120 : vector<1x16xf32> to vector<1x16xf32>
    %136 = vector.broadcast %135 : vector<1x16xf32> to vector<16x16xf32>
    %137 = arith.select %123, %136, %134 : vector<16x16xi1>, vector<16x16xf32>
    %138 = vector.extract_strided_slice %130 {offsets = [3, 3], sizes = [1, 1], strides = [1, 1]} : vector<16x16xf32> to vector<1x1xf32>
    %139 = vector.extract_strided_slice %130 {offsets = [3, 0], sizes = [1, 16], strides = [1, 1]} : vector<16x16xf32> to vector<1x16xf32>
    %140 = vector.broadcast %138 : vector<1x1xf32> to vector<1x16xf32>
    %141 = arith.divf %139, %140 : vector<1x16xf32>
    %142 = vector.extract_strided_slice %137 {offsets = [3, 0], sizes = [1, 16], strides = [1, 1]} : vector<16x16xf32> to vector<1x16xf32>
    %143 = vector.broadcast %138 : vector<1x1xf32> to vector<1x16xf32>
    %144 = arith.divf %142, %143 : vector<1x16xf32>
    %145 = vector.extract_strided_slice %130 {offsets = [0, 3], sizes = [16, 1], strides = [1, 1]} : vector<16x16xf32> to vector<16x1xf32>
    %c3_i32 = arith.constant 3 : i32
    %146 = vector.broadcast %c3_i32 : i32 to vector<16x16xi32>
    %147 = arith.cmpi eq, %65, %146 : vector<16x16xi32>
    %148 = vector.broadcast %145 : vector<16x1xf32> to vector<16x16xf32>
    %149 = vector.broadcast %141 : vector<1x16xf32> to vector<16x16xf32>
    %150 = arith.mulf %148, %149 : vector<16x16xf32>
    %151 = arith.subf %130, %150 : vector<16x16xf32>
    %152 = vector.shape_cast %141 : vector<1x16xf32> to vector<1x16xf32>
    %153 = vector.broadcast %152 : vector<1x16xf32> to vector<16x16xf32>
    %154 = arith.select %147, %153, %151 : vector<16x16xi1>, vector<16x16xf32>
    %155 = vector.broadcast %145 : vector<16x1xf32> to vector<16x16xf32>
    %156 = vector.broadcast %144 : vector<1x16xf32> to vector<16x16xf32>
    %157 = arith.mulf %155, %156 : vector<16x16xf32>
    %158 = arith.subf %137, %157 : vector<16x16xf32>
    %159 = vector.shape_cast %144 : vector<1x16xf32> to vector<1x16xf32>
    %160 = vector.broadcast %159 : vector<1x16xf32> to vector<16x16xf32>
    %161 = arith.select %147, %160, %158 : vector<16x16xi1>, vector<16x16xf32>
    %162 = vector.extract_strided_slice %154 {offsets = [4, 4], sizes = [1, 1], strides = [1, 1]} : vector<16x16xf32> to vector<1x1xf32>
    %163 = vector.extract_strided_slice %154 {offsets = [4, 0], sizes = [1, 16], strides = [1, 1]} : vector<16x16xf32> to vector<1x16xf32>
    %164 = vector.broadcast %162 : vector<1x1xf32> to vector<1x16xf32>
    %165 = arith.divf %163, %164 : vector<1x16xf32>
    %166 = vector.extract_strided_slice %161 {offsets = [4, 0], sizes = [1, 16], strides = [1, 1]} : vector<16x16xf32> to vector<1x16xf32>
    %167 = vector.broadcast %162 : vector<1x1xf32> to vector<1x16xf32>
    %168 = arith.divf %166, %167 : vector<1x16xf32>
    %169 = vector.extract_strided_slice %154 {offsets = [0, 4], sizes = [16, 1], strides = [1, 1]} : vector<16x16xf32> to vector<16x1xf32>
    %c4_i32 = arith.constant 4 : i32
    %170 = vector.broadcast %c4_i32 : i32 to vector<16x16xi32>
    %171 = arith.cmpi eq, %65, %170 : vector<16x16xi32>
    %172 = vector.broadcast %169 : vector<16x1xf32> to vector<16x16xf32>
    %173 = vector.broadcast %165 : vector<1x16xf32> to vector<16x16xf32>
    %174 = arith.mulf %172, %173 : vector<16x16xf32>
    %175 = arith.subf %154, %174 : vector<16x16xf32>
    %176 = vector.shape_cast %165 : vector<1x16xf32> to vector<1x16xf32>
    %177 = vector.broadcast %176 : vector<1x16xf32> to vector<16x16xf32>
    %178 = arith.select %171, %177, %175 : vector<16x16xi1>, vector<16x16xf32>
    %179 = vector.broadcast %169 : vector<16x1xf32> to vector<16x16xf32>
    %180 = vector.broadcast %168 : vector<1x16xf32> to vector<16x16xf32>
    %181 = arith.mulf %179, %180 : vector<16x16xf32>
    %182 = arith.subf %161, %181 : vector<16x16xf32>
    %183 = vector.shape_cast %168 : vector<1x16xf32> to vector<1x16xf32>
    %184 = vector.broadcast %183 : vector<1x16xf32> to vector<16x16xf32>
    %185 = arith.select %171, %184, %182 : vector<16x16xi1>, vector<16x16xf32>
    %186 = vector.extract_strided_slice %178 {offsets = [5, 5], sizes = [1, 1], strides = [1, 1]} : vector<16x16xf32> to vector<1x1xf32>
    %187 = vector.extract_strided_slice %178 {offsets = [5, 0], sizes = [1, 16], strides = [1, 1]} : vector<16x16xf32> to vector<1x16xf32>
    %188 = vector.broadcast %186 : vector<1x1xf32> to vector<1x16xf32>
    %189 = arith.divf %187, %188 : vector<1x16xf32>
    %190 = vector.extract_strided_slice %185 {offsets = [5, 0], sizes = [1, 16], strides = [1, 1]} : vector<16x16xf32> to vector<1x16xf32>
    %191 = vector.broadcast %186 : vector<1x1xf32> to vector<1x16xf32>
    %192 = arith.divf %190, %191 : vector<1x16xf32>
    %193 = vector.extract_strided_slice %178 {offsets = [0, 5], sizes = [16, 1], strides = [1, 1]} : vector<16x16xf32> to vector<16x1xf32>
    %c5_i32 = arith.constant 5 : i32
    %194 = vector.broadcast %c5_i32 : i32 to vector<16x16xi32>
    %195 = arith.cmpi eq, %65, %194 : vector<16x16xi32>
    %196 = vector.broadcast %193 : vector<16x1xf32> to vector<16x16xf32>
    %197 = vector.broadcast %189 : vector<1x16xf32> to vector<16x16xf32>
    %198 = arith.mulf %196, %197 : vector<16x16xf32>
    %199 = arith.subf %178, %198 : vector<16x16xf32>
    %200 = vector.shape_cast %189 : vector<1x16xf32> to vector<1x16xf32>
    %201 = vector.broadcast %200 : vector<1x16xf32> to vector<16x16xf32>
    %202 = arith.select %195, %201, %199 : vector<16x16xi1>, vector<16x16xf32>
    %203 = vector.broadcast %193 : vector<16x1xf32> to vector<16x16xf32>
    %204 = vector.broadcast %192 : vector<1x16xf32> to vector<16x16xf32>
    %205 = arith.mulf %203, %204 : vector<16x16xf32>
    %206 = arith.subf %185, %205 : vector<16x16xf32>
    %207 = vector.shape_cast %192 : vector<1x16xf32> to vector<1x16xf32>
    %208 = vector.broadcast %207 : vector<1x16xf32> to vector<16x16xf32>
    %209 = arith.select %195, %208, %206 : vector<16x16xi1>, vector<16x16xf32>
    %210 = vector.extract_strided_slice %202 {offsets = [6, 6], sizes = [1, 1], strides = [1, 1]} : vector<16x16xf32> to vector<1x1xf32>
    %211 = vector.extract_strided_slice %202 {offsets = [6, 0], sizes = [1, 16], strides = [1, 1]} : vector<16x16xf32> to vector<1x16xf32>
    %212 = vector.broadcast %210 : vector<1x1xf32> to vector<1x16xf32>
    %213 = arith.divf %211, %212 : vector<1x16xf32>
    %214 = vector.extract_strided_slice %209 {offsets = [6, 0], sizes = [1, 16], strides = [1, 1]} : vector<16x16xf32> to vector<1x16xf32>
    %215 = vector.broadcast %210 : vector<1x1xf32> to vector<1x16xf32>
    %216 = arith.divf %214, %215 : vector<1x16xf32>
    %217 = vector.extract_strided_slice %202 {offsets = [0, 6], sizes = [16, 1], strides = [1, 1]} : vector<16x16xf32> to vector<16x1xf32>
    %c6_i32 = arith.constant 6 : i32
    %218 = vector.broadcast %c6_i32 : i32 to vector<16x16xi32>
    %219 = arith.cmpi eq, %65, %218 : vector<16x16xi32>
    %220 = vector.broadcast %217 : vector<16x1xf32> to vector<16x16xf32>
    %221 = vector.broadcast %213 : vector<1x16xf32> to vector<16x16xf32>
    %222 = arith.mulf %220, %221 : vector<16x16xf32>
    %223 = arith.subf %202, %222 : vector<16x16xf32>
    %224 = vector.shape_cast %213 : vector<1x16xf32> to vector<1x16xf32>
    %225 = vector.broadcast %224 : vector<1x16xf32> to vector<16x16xf32>
    %226 = arith.select %219, %225, %223 : vector<16x16xi1>, vector<16x16xf32>
    %227 = vector.broadcast %217 : vector<16x1xf32> to vector<16x16xf32>
    %228 = vector.broadcast %216 : vector<1x16xf32> to vector<16x16xf32>
    %229 = arith.mulf %227, %228 : vector<16x16xf32>
    %230 = arith.subf %209, %229 : vector<16x16xf32>
    %231 = vector.shape_cast %216 : vector<1x16xf32> to vector<1x16xf32>
    %232 = vector.broadcast %231 : vector<1x16xf32> to vector<16x16xf32>
    %233 = arith.select %219, %232, %230 : vector<16x16xi1>, vector<16x16xf32>
    %234 = vector.extract_strided_slice %226 {offsets = [7, 7], sizes = [1, 1], strides = [1, 1]} : vector<16x16xf32> to vector<1x1xf32>
    %235 = vector.extract_strided_slice %226 {offsets = [7, 0], sizes = [1, 16], strides = [1, 1]} : vector<16x16xf32> to vector<1x16xf32>
    %236 = vector.broadcast %234 : vector<1x1xf32> to vector<1x16xf32>
    %237 = arith.divf %235, %236 : vector<1x16xf32>
    %238 = vector.extract_strided_slice %233 {offsets = [7, 0], sizes = [1, 16], strides = [1, 1]} : vector<16x16xf32> to vector<1x16xf32>
    %239 = vector.broadcast %234 : vector<1x1xf32> to vector<1x16xf32>
    %240 = arith.divf %238, %239 : vector<1x16xf32>
    %241 = vector.extract_strided_slice %226 {offsets = [0, 7], sizes = [16, 1], strides = [1, 1]} : vector<16x16xf32> to vector<16x1xf32>
    %c7_i32 = arith.constant 7 : i32
    %242 = vector.broadcast %c7_i32 : i32 to vector<16x16xi32>
    %243 = arith.cmpi eq, %65, %242 : vector<16x16xi32>
    %244 = vector.broadcast %241 : vector<16x1xf32> to vector<16x16xf32>
    %245 = vector.broadcast %237 : vector<1x16xf32> to vector<16x16xf32>
    %246 = arith.mulf %244, %245 : vector<16x16xf32>
    %247 = arith.subf %226, %246 : vector<16x16xf32>
    %248 = vector.shape_cast %237 : vector<1x16xf32> to vector<1x16xf32>
    %249 = vector.broadcast %248 : vector<1x16xf32> to vector<16x16xf32>
    %250 = arith.select %243, %249, %247 : vector<16x16xi1>, vector<16x16xf32>
    %251 = vector.broadcast %241 : vector<16x1xf32> to vector<16x16xf32>
    %252 = vector.broadcast %240 : vector<1x16xf32> to vector<16x16xf32>
    %253 = arith.mulf %251, %252 : vector<16x16xf32>
    %254 = arith.subf %233, %253 : vector<16x16xf32>
    %255 = vector.shape_cast %240 : vector<1x16xf32> to vector<1x16xf32>
    %256 = vector.broadcast %255 : vector<1x16xf32> to vector<16x16xf32>
    %257 = arith.select %243, %256, %254 : vector<16x16xi1>, vector<16x16xf32>
    %258 = vector.extract_strided_slice %250 {offsets = [8, 8], sizes = [1, 1], strides = [1, 1]} : vector<16x16xf32> to vector<1x1xf32>
    %259 = vector.extract_strided_slice %250 {offsets = [8, 0], sizes = [1, 16], strides = [1, 1]} : vector<16x16xf32> to vector<1x16xf32>
    %260 = vector.broadcast %258 : vector<1x1xf32> to vector<1x16xf32>
    %261 = arith.divf %259, %260 : vector<1x16xf32>
    %262 = vector.extract_strided_slice %257 {offsets = [8, 0], sizes = [1, 16], strides = [1, 1]} : vector<16x16xf32> to vector<1x16xf32>
    %263 = vector.broadcast %258 : vector<1x1xf32> to vector<1x16xf32>
    %264 = arith.divf %262, %263 : vector<1x16xf32>
    %265 = vector.extract_strided_slice %250 {offsets = [0, 8], sizes = [16, 1], strides = [1, 1]} : vector<16x16xf32> to vector<16x1xf32>
    %c8_i32 = arith.constant 8 : i32
    %266 = vector.broadcast %c8_i32 : i32 to vector<16x16xi32>
    %267 = arith.cmpi eq, %65, %266 : vector<16x16xi32>
    %268 = vector.broadcast %265 : vector<16x1xf32> to vector<16x16xf32>
    %269 = vector.broadcast %261 : vector<1x16xf32> to vector<16x16xf32>
    %270 = arith.mulf %268, %269 : vector<16x16xf32>
    %271 = arith.subf %250, %270 : vector<16x16xf32>
    %272 = vector.shape_cast %261 : vector<1x16xf32> to vector<1x16xf32>
    %273 = vector.broadcast %272 : vector<1x16xf32> to vector<16x16xf32>
    %274 = arith.select %267, %273, %271 : vector<16x16xi1>, vector<16x16xf32>
    %275 = vector.broadcast %265 : vector<16x1xf32> to vector<16x16xf32>
    %276 = vector.broadcast %264 : vector<1x16xf32> to vector<16x16xf32>
    %277 = arith.mulf %275, %276 : vector<16x16xf32>
    %278 = arith.subf %257, %277 : vector<16x16xf32>
    %279 = vector.shape_cast %264 : vector<1x16xf32> to vector<1x16xf32>
    %280 = vector.broadcast %279 : vector<1x16xf32> to vector<16x16xf32>
    %281 = arith.select %267, %280, %278 : vector<16x16xi1>, vector<16x16xf32>
    %282 = vector.extract_strided_slice %274 {offsets = [9, 9], sizes = [1, 1], strides = [1, 1]} : vector<16x16xf32> to vector<1x1xf32>
    %283 = vector.extract_strided_slice %274 {offsets = [9, 0], sizes = [1, 16], strides = [1, 1]} : vector<16x16xf32> to vector<1x16xf32>
    %284 = vector.broadcast %282 : vector<1x1xf32> to vector<1x16xf32>
    %285 = arith.divf %283, %284 : vector<1x16xf32>
    %286 = vector.extract_strided_slice %281 {offsets = [9, 0], sizes = [1, 16], strides = [1, 1]} : vector<16x16xf32> to vector<1x16xf32>
    %287 = vector.broadcast %282 : vector<1x1xf32> to vector<1x16xf32>
    %288 = arith.divf %286, %287 : vector<1x16xf32>
    %289 = vector.extract_strided_slice %274 {offsets = [0, 9], sizes = [16, 1], strides = [1, 1]} : vector<16x16xf32> to vector<16x1xf32>
    %c9_i32 = arith.constant 9 : i32
    %290 = vector.broadcast %c9_i32 : i32 to vector<16x16xi32>
    %291 = arith.cmpi eq, %65, %290 : vector<16x16xi32>
    %292 = vector.broadcast %289 : vector<16x1xf32> to vector<16x16xf32>
    %293 = vector.broadcast %285 : vector<1x16xf32> to vector<16x16xf32>
    %294 = arith.mulf %292, %293 : vector<16x16xf32>
    %295 = arith.subf %274, %294 : vector<16x16xf32>
    %296 = vector.shape_cast %285 : vector<1x16xf32> to vector<1x16xf32>
    %297 = vector.broadcast %296 : vector<1x16xf32> to vector<16x16xf32>
    %298 = arith.select %291, %297, %295 : vector<16x16xi1>, vector<16x16xf32>
    %299 = vector.broadcast %289 : vector<16x1xf32> to vector<16x16xf32>
    %300 = vector.broadcast %288 : vector<1x16xf32> to vector<16x16xf32>
    %301 = arith.mulf %299, %300 : vector<16x16xf32>
    %302 = arith.subf %281, %301 : vector<16x16xf32>
    %303 = vector.shape_cast %288 : vector<1x16xf32> to vector<1x16xf32>
    %304 = vector.broadcast %303 : vector<1x16xf32> to vector<16x16xf32>
    %305 = arith.select %291, %304, %302 : vector<16x16xi1>, vector<16x16xf32>
    %306 = vector.extract_strided_slice %298 {offsets = [10, 10], sizes = [1, 1], strides = [1, 1]} : vector<16x16xf32> to vector<1x1xf32>
    %307 = vector.extract_strided_slice %298 {offsets = [10, 0], sizes = [1, 16], strides = [1, 1]} : vector<16x16xf32> to vector<1x16xf32>
    %308 = vector.broadcast %306 : vector<1x1xf32> to vector<1x16xf32>
    %309 = arith.divf %307, %308 : vector<1x16xf32>
    %310 = vector.extract_strided_slice %305 {offsets = [10, 0], sizes = [1, 16], strides = [1, 1]} : vector<16x16xf32> to vector<1x16xf32>
    %311 = vector.broadcast %306 : vector<1x1xf32> to vector<1x16xf32>
    %312 = arith.divf %310, %311 : vector<1x16xf32>
    %313 = vector.extract_strided_slice %298 {offsets = [0, 10], sizes = [16, 1], strides = [1, 1]} : vector<16x16xf32> to vector<16x1xf32>
    %c10_i32 = arith.constant 10 : i32
    %314 = vector.broadcast %c10_i32 : i32 to vector<16x16xi32>
    %315 = arith.cmpi eq, %65, %314 : vector<16x16xi32>
    %316 = vector.broadcast %313 : vector<16x1xf32> to vector<16x16xf32>
    %317 = vector.broadcast %309 : vector<1x16xf32> to vector<16x16xf32>
    %318 = arith.mulf %316, %317 : vector<16x16xf32>
    %319 = arith.subf %298, %318 : vector<16x16xf32>
    %320 = vector.shape_cast %309 : vector<1x16xf32> to vector<1x16xf32>
    %321 = vector.broadcast %320 : vector<1x16xf32> to vector<16x16xf32>
    %322 = arith.select %315, %321, %319 : vector<16x16xi1>, vector<16x16xf32>
    %323 = vector.broadcast %313 : vector<16x1xf32> to vector<16x16xf32>
    %324 = vector.broadcast %312 : vector<1x16xf32> to vector<16x16xf32>
    %325 = arith.mulf %323, %324 : vector<16x16xf32>
    %326 = arith.subf %305, %325 : vector<16x16xf32>
    %327 = vector.shape_cast %312 : vector<1x16xf32> to vector<1x16xf32>
    %328 = vector.broadcast %327 : vector<1x16xf32> to vector<16x16xf32>
    %329 = arith.select %315, %328, %326 : vector<16x16xi1>, vector<16x16xf32>
    %330 = vector.extract_strided_slice %322 {offsets = [11, 11], sizes = [1, 1], strides = [1, 1]} : vector<16x16xf32> to vector<1x1xf32>
    %331 = vector.extract_strided_slice %322 {offsets = [11, 0], sizes = [1, 16], strides = [1, 1]} : vector<16x16xf32> to vector<1x16xf32>
    %332 = vector.broadcast %330 : vector<1x1xf32> to vector<1x16xf32>
    %333 = arith.divf %331, %332 : vector<1x16xf32>
    %334 = vector.extract_strided_slice %329 {offsets = [11, 0], sizes = [1, 16], strides = [1, 1]} : vector<16x16xf32> to vector<1x16xf32>
    %335 = vector.broadcast %330 : vector<1x1xf32> to vector<1x16xf32>
    %336 = arith.divf %334, %335 : vector<1x16xf32>
    %337 = vector.extract_strided_slice %322 {offsets = [0, 11], sizes = [16, 1], strides = [1, 1]} : vector<16x16xf32> to vector<16x1xf32>
    %c11_i32 = arith.constant 11 : i32
    %338 = vector.broadcast %c11_i32 : i32 to vector<16x16xi32>
    %339 = arith.cmpi eq, %65, %338 : vector<16x16xi32>
    %340 = vector.broadcast %337 : vector<16x1xf32> to vector<16x16xf32>
    %341 = vector.broadcast %333 : vector<1x16xf32> to vector<16x16xf32>
    %342 = arith.mulf %340, %341 : vector<16x16xf32>
    %343 = arith.subf %322, %342 : vector<16x16xf32>
    %344 = vector.shape_cast %333 : vector<1x16xf32> to vector<1x16xf32>
    %345 = vector.broadcast %344 : vector<1x16xf32> to vector<16x16xf32>
    %346 = arith.select %339, %345, %343 : vector<16x16xi1>, vector<16x16xf32>
    %347 = vector.broadcast %337 : vector<16x1xf32> to vector<16x16xf32>
    %348 = vector.broadcast %336 : vector<1x16xf32> to vector<16x16xf32>
    %349 = arith.mulf %347, %348 : vector<16x16xf32>
    %350 = arith.subf %329, %349 : vector<16x16xf32>
    %351 = vector.shape_cast %336 : vector<1x16xf32> to vector<1x16xf32>
    %352 = vector.broadcast %351 : vector<1x16xf32> to vector<16x16xf32>
    %353 = arith.select %339, %352, %350 : vector<16x16xi1>, vector<16x16xf32>
    %354 = vector.extract_strided_slice %346 {offsets = [12, 12], sizes = [1, 1], strides = [1, 1]} : vector<16x16xf32> to vector<1x1xf32>
    %355 = vector.extract_strided_slice %346 {offsets = [12, 0], sizes = [1, 16], strides = [1, 1]} : vector<16x16xf32> to vector<1x16xf32>
    %356 = vector.broadcast %354 : vector<1x1xf32> to vector<1x16xf32>
    %357 = arith.divf %355, %356 : vector<1x16xf32>
    %358 = vector.extract_strided_slice %353 {offsets = [12, 0], sizes = [1, 16], strides = [1, 1]} : vector<16x16xf32> to vector<1x16xf32>
    %359 = vector.broadcast %354 : vector<1x1xf32> to vector<1x16xf32>
    %360 = arith.divf %358, %359 : vector<1x16xf32>
    %361 = vector.extract_strided_slice %346 {offsets = [0, 12], sizes = [16, 1], strides = [1, 1]} : vector<16x16xf32> to vector<16x1xf32>
    %c12_i32 = arith.constant 12 : i32
    %362 = vector.broadcast %c12_i32 : i32 to vector<16x16xi32>
    %363 = arith.cmpi eq, %65, %362 : vector<16x16xi32>
    %364 = vector.broadcast %361 : vector<16x1xf32> to vector<16x16xf32>
    %365 = vector.broadcast %357 : vector<1x16xf32> to vector<16x16xf32>
    %366 = arith.mulf %364, %365 : vector<16x16xf32>
    %367 = arith.subf %346, %366 : vector<16x16xf32>
    %368 = vector.shape_cast %357 : vector<1x16xf32> to vector<1x16xf32>
    %369 = vector.broadcast %368 : vector<1x16xf32> to vector<16x16xf32>
    %370 = arith.select %363, %369, %367 : vector<16x16xi1>, vector<16x16xf32>
    %371 = vector.broadcast %361 : vector<16x1xf32> to vector<16x16xf32>
    %372 = vector.broadcast %360 : vector<1x16xf32> to vector<16x16xf32>
    %373 = arith.mulf %371, %372 : vector<16x16xf32>
    %374 = arith.subf %353, %373 : vector<16x16xf32>
    %375 = vector.shape_cast %360 : vector<1x16xf32> to vector<1x16xf32>
    %376 = vector.broadcast %375 : vector<1x16xf32> to vector<16x16xf32>
    %377 = arith.select %363, %376, %374 : vector<16x16xi1>, vector<16x16xf32>
    %378 = vector.extract_strided_slice %370 {offsets = [13, 13], sizes = [1, 1], strides = [1, 1]} : vector<16x16xf32> to vector<1x1xf32>
    %379 = vector.extract_strided_slice %370 {offsets = [13, 0], sizes = [1, 16], strides = [1, 1]} : vector<16x16xf32> to vector<1x16xf32>
    %380 = vector.broadcast %378 : vector<1x1xf32> to vector<1x16xf32>
    %381 = arith.divf %379, %380 : vector<1x16xf32>
    %382 = vector.extract_strided_slice %377 {offsets = [13, 0], sizes = [1, 16], strides = [1, 1]} : vector<16x16xf32> to vector<1x16xf32>
    %383 = vector.broadcast %378 : vector<1x1xf32> to vector<1x16xf32>
    %384 = arith.divf %382, %383 : vector<1x16xf32>
    %385 = vector.extract_strided_slice %370 {offsets = [0, 13], sizes = [16, 1], strides = [1, 1]} : vector<16x16xf32> to vector<16x1xf32>
    %c13_i32 = arith.constant 13 : i32
    %386 = vector.broadcast %c13_i32 : i32 to vector<16x16xi32>
    %387 = arith.cmpi eq, %65, %386 : vector<16x16xi32>
    %388 = vector.broadcast %385 : vector<16x1xf32> to vector<16x16xf32>
    %389 = vector.broadcast %381 : vector<1x16xf32> to vector<16x16xf32>
    %390 = arith.mulf %388, %389 : vector<16x16xf32>
    %391 = arith.subf %370, %390 : vector<16x16xf32>
    %392 = vector.shape_cast %381 : vector<1x16xf32> to vector<1x16xf32>
    %393 = vector.broadcast %392 : vector<1x16xf32> to vector<16x16xf32>
    %394 = arith.select %387, %393, %391 : vector<16x16xi1>, vector<16x16xf32>
    %395 = vector.broadcast %385 : vector<16x1xf32> to vector<16x16xf32>
    %396 = vector.broadcast %384 : vector<1x16xf32> to vector<16x16xf32>
    %397 = arith.mulf %395, %396 : vector<16x16xf32>
    %398 = arith.subf %377, %397 : vector<16x16xf32>
    %399 = vector.shape_cast %384 : vector<1x16xf32> to vector<1x16xf32>
    %400 = vector.broadcast %399 : vector<1x16xf32> to vector<16x16xf32>
    %401 = arith.select %387, %400, %398 : vector<16x16xi1>, vector<16x16xf32>
    %402 = vector.extract_strided_slice %394 {offsets = [14, 14], sizes = [1, 1], strides = [1, 1]} : vector<16x16xf32> to vector<1x1xf32>
    %403 = vector.extract_strided_slice %394 {offsets = [14, 0], sizes = [1, 16], strides = [1, 1]} : vector<16x16xf32> to vector<1x16xf32>
    %404 = vector.broadcast %402 : vector<1x1xf32> to vector<1x16xf32>
    %405 = arith.divf %403, %404 : vector<1x16xf32>
    %406 = vector.extract_strided_slice %401 {offsets = [14, 0], sizes = [1, 16], strides = [1, 1]} : vector<16x16xf32> to vector<1x16xf32>
    %407 = vector.broadcast %402 : vector<1x1xf32> to vector<1x16xf32>
    %408 = arith.divf %406, %407 : vector<1x16xf32>
    %409 = vector.extract_strided_slice %394 {offsets = [0, 14], sizes = [16, 1], strides = [1, 1]} : vector<16x16xf32> to vector<16x1xf32>
    %c14_i32 = arith.constant 14 : i32
    %410 = vector.broadcast %c14_i32 : i32 to vector<16x16xi32>
    %411 = arith.cmpi eq, %65, %410 : vector<16x16xi32>
    %412 = vector.broadcast %409 : vector<16x1xf32> to vector<16x16xf32>
    %413 = vector.broadcast %405 : vector<1x16xf32> to vector<16x16xf32>
    %414 = arith.mulf %412, %413 : vector<16x16xf32>
    %415 = arith.subf %394, %414 : vector<16x16xf32>
    %416 = vector.shape_cast %405 : vector<1x16xf32> to vector<1x16xf32>
    %417 = vector.broadcast %416 : vector<1x16xf32> to vector<16x16xf32>
    %418 = arith.select %411, %417, %415 : vector<16x16xi1>, vector<16x16xf32>
    %419 = vector.broadcast %409 : vector<16x1xf32> to vector<16x16xf32>
    %420 = vector.broadcast %408 : vector<1x16xf32> to vector<16x16xf32>
    %421 = arith.mulf %419, %420 : vector<16x16xf32>
    %422 = arith.subf %401, %421 : vector<16x16xf32>
    %423 = vector.shape_cast %408 : vector<1x16xf32> to vector<1x16xf32>
    %424 = vector.broadcast %423 : vector<1x16xf32> to vector<16x16xf32>
    %425 = arith.select %411, %424, %422 : vector<16x16xi1>, vector<16x16xf32>
    %426 = vector.extract_strided_slice %418 {offsets = [15, 15], sizes = [1, 1], strides = [1, 1]} : vector<16x16xf32> to vector<1x1xf32>
    %427 = vector.extract_strided_slice %425 {offsets = [15, 0], sizes = [1, 16], strides = [1, 1]} : vector<16x16xf32> to vector<1x16xf32>
    %428 = vector.broadcast %426 : vector<1x1xf32> to vector<1x16xf32>
    %429 = arith.divf %427, %428 : vector<1x16xf32>
    %430 = vector.extract_strided_slice %418 {offsets = [0, 15], sizes = [16, 1], strides = [1, 1]} : vector<16x16xf32> to vector<16x1xf32>
    %c15_i32 = arith.constant 15 : i32
    %431 = vector.broadcast %c15_i32 : i32 to vector<16x16xi32>
    %432 = arith.cmpi eq, %65, %431 : vector<16x16xi32>
    %433 = vector.broadcast %430 : vector<16x1xf32> to vector<16x16xf32>
    %434 = vector.broadcast %429 : vector<1x16xf32> to vector<16x16xf32>
    %435 = arith.mulf %433, %434 : vector<16x16xf32>
    %436 = arith.subf %425, %435 : vector<16x16xf32>
    %437 = vector.shape_cast %429 : vector<1x16xf32> to vector<1x16xf32>
    %438 = vector.broadcast %437 : vector<1x16xf32> to vector<16x16xf32>
    %439 = arith.select %432, %438, %436 : vector<16x16xi1>, vector<16x16xf32>
    %cst_23 = arith.constant dense<0.000000e+00> : vector<4x16xf32>
    %440 = tpu.matmul %1, %56, %cst_23 {dimension_numbers = #tpu.dot_dimension_numbers<[1], [1], [0], [0], [0, 0, 1, 0], [], []>} : vector<4x256xf32>, vector<16x256xf32>, vector<4x16xf32> -> vector<4x16xf32>
    %cst_24 = arith.constant dense<0.000000e+00> : vector<4x16xf32>
    %441 = tpu.matmul %440, %439, %cst_24 {dimension_numbers = #tpu.dot_dimension_numbers<[1], [1], [0], [0], [0, 0, 1, 0], [], []>} : vector<4x16xf32>, vector<16x16xf32>, vector<4x16xf32> -> vector<4x16xf32>
    %cst_25 = arith.constant dense<0.000000e+00> : vector<4x256xf32>
    %442 = tpu.matmul %441, %56, %cst_25 {dimension_numbers = #tpu.dot_dimension_numbers<[1], [0], [0], [1], [0, 0, 1, 1], [], []>} : vector<4x16xf32>, vector<16x256xf32>, vector<4x256xf32> -> vector<4x256xf32>
    %c0_26 = arith.constant 0 : index
    %c0_27 = arith.constant 0 : index
    %c0_28 = arith.constant 0 : index
    %443 = vector.load %arg8[%c0_26, %c0_27, %c0_28] : memref<1x4x256xf32, #tpu.memory_space<vmem>>, vector<1x4x256xf32>
    %444 = vector.shape_cast %443 : vector<1x4x256xf32> to vector<4x256xf32>
    %445 = vector.shape_cast %442 : vector<4x256xf32> to vector<1x4x256xf32>
    tpu.vector_store %arg8[%c0_26, %c0_27, %c0_28], %445 {strides = array<i32>} : memref<1x4x256xf32, #tpu.memory_space<vmem>>, vector<1x4x256xf32>,
    return
  }
  func.func @transform_0(%arg0: i32) -> (i32, i32, i32) {
    %c0_i32 = arith.constant 0 : i32
    %c0_i32_0 = arith.constant 0 : i32
    %c0_i32_1 = arith.constant 0 : i32
    return %arg0, %c0_i32, %c0_i32_0 : i32, i32, i32
  }
  func.func @transform_1(%arg0: i32) -> (i32, i32) {
    %c0_i32 = arith.constant 0 : i32
    %c0_i32_0 = arith.constant 0 : i32
    %c0_i32_1 = arith.constant 0 : i32
    return %c0_i32, %c0_i32_0 : i32, i32
  }
  func.func @transform_2(%arg0: i32) -> (i32, i32) {
    %c0_i32 = arith.constant 0 : i32
    %c0_i32_0 = arith.constant 0 : i32
    %c0_i32_1 = arith.constant 0 : i32
    return %c0_i32, %c0_i32_0 : i32, i32
  }
  func.func @transform_3(%arg0: i32) -> (i32, i32) {
    %c0_i32 = arith.constant 0 : i32
    %c0_i32_0 = arith.constant 0 : i32
    %c0_i32_1 = arith.constant 0 : i32
    return %c0_i32, %c0_i32_0 : i32, i32
  }
  func.func @transform_4(%arg0: i32) -> (i32, i32) {
    %c0_i32 = arith.constant 0 : i32
    %c0_i32_0 = arith.constant 0 : i32
    %c0_i32_1 = arith.constant 0 : i32
    return %c0_i32, %c0_i32_0 : i32, i32
  }
  func.func @transform_5(%arg0: i32) -> (i32, i32) {
    %c0_i32 = arith.constant 0 : i32
    %c0_i32_0 = arith.constant 0 : i32
    %c0_i32_1 = arith.constant 0 : i32
    return %c0_i32, %c0_i32_0 : i32, i32
  }
  func.func @transform_6(%arg0: i32) -> (i32, i32) {
    %c0_i32 = arith.constant 0 : i32
    %c0_i32_0 = arith.constant 0 : i32
    %c0_i32_1 = arith.constant 0 : i32
    return %c0_i32, %c0_i32_0 : i32, i32
  }
  func.func @transform_7(%arg0: i32) -> (i32, i32, i32) {
    %c0_i32 = arith.constant 0 : i32
    %c0_i32_0 = arith.constant 0 : i32
    %c0_i32_1 = arith.constant 0 : i32
    return %arg0, %c0_i32, %c0_i32_0 : i32, i32, i32
  }
}

</mosaic_0001>

<llo_original>
// kernel: tpu_custom_call.1
$region0: #{tpu_custom_call.1}
  #allocation0 [shape = 'u32[]', space=smem, size = 0x4, offset = 0x4, fixed_abs, tag = 'smem constant byte address 0x4 - core index']
  #allocation1 [shape = 'u32[72,128]{1,0:T(1,128)}', space=vmem, size = 0x9000, scoped, tag = 'internal scratch']
  %s0 = inlined_call_operand.vmem [shape: f32[2,4,256], index: 0, kind: input, shape index: {}]
  %s1 = inlined_call_operand.vmem [shape: f32[16,4], index: 1, kind: input, shape index: {}]
  %s2 = inlined_call_operand.vmem [shape: f32[16,1], index: 2, kind: input, shape index: {}]
  %s3 = inlined_call_operand.vmem [shape: f32[16,16], index: 3, kind: input, shape index: {}]
  %s4 = inlined_call_operand.vmem [shape: f32[16,1], index: 4, kind: input, shape index: {}]
  %s5 = inlined_call_operand.vmem [shape: f32[16,16], index: 5, kind: input, shape index: {}]
  %s6 = inlined_call_operand.vmem [shape: f32[16,1], index: 6, kind: input, shape index: {}]
  %s7 = inlined_call_operand.hbm [shape: f32[2,4,256], index: 7, kind: output, shape index: {}]
  %s8 = sld [smem:[#allocation0]]
  $region61: #{tpu_custom_call.1} parent=0
    _
  %s10 = ssub.s32 1, %s8
  %s11 = scalar_select 0, %s10, %s8
  $region1: #{tpu_custom_call.1} parent=0
    #allocation2 [shape = 'u8[8192]{0}', space=vmem, size = 0x2000, scoped, tag = 'output window, operand 0']
    #allocation3 [shape = 's32[2]{0}', space=sflag, size = 0x8, scoped, tag = 'scoped memory for tpu_custom_call.1']
    %12 = vsyncpa [#allocation3], 0
    %s13 = scalar_lea.sflag [#allocation3], 1
    %14 = vsyncpa %s13, 0
    loop: start=0, step=1, limit=4
    $region2: #{tpu_custom_call.1} parent=1 // loop_pre_header
      _
    $region3: #{tpu_custom_call.1} parent=1 // loop_header
      %s16 = sphi 0, %s20
      %p17 = scmp.ge.s32.totalorder %s16, 4
      %s26 = sphi 0, %s28
      %s29 = sphi 0, %s26
      %s30 = sphi 0, %s29
      %s46 = sphi 0, %s30
      %s50 = sphi 0, %s50
      %s52 = sphi 0, %s50
      %s53 = sphi 0, %s52
      %s67 = sphi 0, %s53
      %s71 = sphi 0, %s71
      %s73 = sphi 0, %s71
      %s74 = sphi 0, %s73
      %s88 = sphi 0, %s74
      %s92 = sphi 0, %s92
      %s94 = sphi 0, %s92
      %s95 = sphi 0, %s94
      %s109 = sphi 0, %s95
      %s113 = sphi 0, %s113
      %s115 = sphi 0, %s113
      %s116 = sphi 0, %s115
      %s130 = sphi 0, %s116
      %s134 = sphi 0, %s134
      %s136 = sphi 0, %s134
      %s137 = sphi 0, %s136
      %s151 = sphi 0, %s137
      %s155 = sphi 0, %s155
      %s157 = sphi 0, %s155
      %s158 = sphi 0, %s157
      %s172 = sphi 0, %s158
      %s178 = sphi 0, %s180
      %s181 = sphi 0, %s178
      %s182 = sphi 0, %s181
      %s198 = sphi 0, %s182
    $region4: #{tpu_custom_call.1} parent=1 // loop_header_branch
      %19 = sbr.rel (%p17) target = $region8
    $region5: #{tpu_custom_call.1} parent=1 // loop_body
      %s21 = ssub.s32 %s16, 1
      %s22 = ssub.s32 %s16, 2
      %s23 = sadd.s32 %s16, 1
      %s24 = ssub.s32 %s16, %s23
      %p25 = scmp.eq.s32.totalorder %s24, 0
      %s27 = sadd.s32 %s26, 1
      %s28 = scalar_select %p25, %s26, %s27
      %p31 = pneg %p25
      %p32 = scmp.eq.s32.totalorder %s16, 1
      %p33 = por %p31, %p32
      %p34 = scmp.ne.s32.totalorder %s26, %s29
      %p35 = scmp.eq.s32.totalorder %s16, 0
      %p36 = por %p34, %p35
      %p37 = scmp.ne.s32.totalorder %s26, %s29
      %p38 = scmp.eq.s32.totalorder %s21, 1
      %p39 = por %p37, %p38
      %p40 = scmp.ne.s32.totalorder %s29, %s30
      %p41 = scmp.eq.s32.totalorder %s21, 0
      %p42 = por %p40, %p41
      %p43 = scmp.ne.s32.totalorder %s29, %s30
      %p44 = scmp.eq.s32.totalorder %s22, 1
      %p45 = por %p43, %p44
      %p47 = scmp.ne.s32.totalorder %s30, %s46
      %p48 = scmp.eq.s32.totalorder %s22, 0
      %p49 = por %p47, %p48
      %s51 = sadd.s32 %s50, 1
      %p54 = scmp.eq.s32.totalorder %s16, 1
      %p55 = scmp.ne.s32.totalorder %s50, %s52
      %p56 = scmp.eq.s32.totalorder %s16, 0
      %p57 = por %p55, %p56
      %p58 = scmp.ne.s32.totalorder %s50, %s52
      %p59 = scmp.eq.s32.totalorder %s21, 1
      %p60 = por %p58, %p59
      %p61 = scmp.ne.s32.totalorder %s52, %s53
      %p62 = scmp.eq.s32.totalorder %s21, 0
      %p63 = por %p61, %p62
      %p64 = scmp.ne.s32.totalorder %s52, %s53
      %p65 = scmp.eq.s32.totalorder %s22, 1
      %p66 = por %p64, %p65
      %p68 = scmp.ne.s32.totalorder %s53, %s67
      %p69 = scmp.eq.s32.totalorder %s22, 0
      %p70 = por %p68, %p69
      %s72 = sadd.s32 %s71, 1
      %p75 = scmp.eq.s32.totalorder %s16, 1
      %p76 = scmp.ne.s32.totalorder %s71, %s73
      %p77 = scmp.eq.s32.totalorder %s16, 0
      %p78 = por %p76, %p77
      %p79 = scmp.ne.s32.totalorder %s71, %s73
      %p80 = scmp.eq.s32.totalorder %s21, 1
      %p81 = por %p79, %p80
      %p82 = scmp.ne.s32.totalorder %s73, %s74
      %p83 = scmp.eq.s32.totalorder %s21, 0
      %p84 = por %p82, %p83
      %p85 = scmp.ne.s32.totalorder %s73, %s74
      %p86 = scmp.eq.s32.totalorder %s22, 1
      %p87 = por %p85, %p86
      %p89 = scmp.ne.s32.totalorder %s74, %s88
      %p90 = scmp.eq.s32.totalorder %s22, 0
      %p91 = por %p89, %p90
      %s93 = sadd.s32 %s92, 1
      %p96 = scmp.eq.s32.totalorder %s16, 1
      %p97 = scmp.ne.s32.totalorder %s92, %s94
      %p98 = scmp.eq.s32.totalorder %s16, 0
      %p99 = por %p97, %p98
      %p100 = scmp.ne.s32.totalorder %s92, %s94
      %p101 = scmp.eq.s32.totalorder %s21, 1
      %p102 = por %p100, %p101
      %p103 = scmp.ne.s32.totalorder %s94, %s95
      %p104 = scmp.eq.s32.totalorder %s21, 0
      %p105 = por %p103, %p104
      %p106 = scmp.ne.s32.totalorder %s94, %s95
      %p107 = scmp.eq.s32.totalorder %s22, 1
      %p108 = por %p106, %p107
      %p110 = scmp.ne.s32.totalorder %s95, %s109
      %p111 = scmp.eq.s32.totalorder %s22, 0
      %p112 = por %p110, %p111
      %s114 = sadd.s32 %s113, 1
      %p117 = scmp.eq.s32.totalorder %s16, 1
      %p118 = scmp.ne.s32.totalorder %s113, %s115
      %p119 = scmp.eq.s32.totalorder %s16, 0
      %p120 = por %p118, %p119
      %p121 = scmp.ne.s32.totalorder %s113, %s115
      %p122 = scmp.eq.s32.totalorder %s21, 1
      %p123 = por %p121, %p122
      %p124 = scmp.ne.s32.totalorder %s115, %s116
      %p125 = scmp.eq.s32.totalorder %s21, 0
      %p126 = por %p124, %p125
      %p127 = scmp.ne.s32.totalorder %s115, %s116
      %p128 = scmp.eq.s32.totalorder %s22, 1
      %p129 = por %p127, %p128
      %p131 = scmp.ne.s32.totalorder %s116, %s130
      %p132 = scmp.eq.s32.totalorder %s22, 0
      %p133 = por %p131, %p132
      %s135 = sadd.s32 %s134, 1
      %p138 = scmp.eq.s32.totalorder %s16, 1
      %p139 = scmp.ne.s32.totalorder %s134, %s136
      %p140 = scmp.eq.s32.totalorder %s16, 0
      %p141 = por %p139, %p140
      %p142 = scmp.ne.s32.totalorder %s134, %s136
      %p143 = scmp.eq.s32.totalorder %s21, 1
      %p144 = por %p142, %p143
      %p145 = scmp.ne.s32.totalorder %s136, %s137
      %p146 = scmp.eq.s32.totalorder %s21, 0
      %p147 = por %p145, %p146
      %p148 = scmp.ne.s32.totalorder %s136, %s137
      %p149 = scmp.eq.s32.totalorder %s22, 1
      %p150 = por %p148, %p149
      %p152 = scmp.ne.s32.totalorder %s137, %s151
      %p153 = scmp.eq.s32.totalorder %s22, 0
      %p154 = por %p152, %p153
      %s156 = sadd.s32 %s155, 1
      %p159 = scmp.eq.s32.totalorder %s16, 1
      %p160 = scmp.ne.s32.totalorder %s155, %s157
      %p161 = scmp.eq.s32.totalorder %s16, 0
      %p162 = por %p160, %p161
      %p163 = scmp.ne.s32.totalorder %s155, %s157
      %p164 = scmp.eq.s32.totalorder %s21, 1
      %p165 = por %p163, %p164
      %p166 = scmp.ne.s32.totalorder %s157, %s158
      %p167 = scmp.eq.s32.totalorder %s21, 0
      %p168 = por %p166, %p167
      %p169 = scmp.ne.s32.totalorder %s157, %s158
      %p170 = scmp.eq.s32.totalorder %s22, 1
      %p171 = por %p169, %p170
      %p173 = scmp.ne.s32.totalorder %s158, %s172
      %p174 = scmp.eq.s32.totalorder %s22, 0
      %p175 = por %p173, %p174
      %s176 = ssub.s32 %s16, %s23
      %p177 = scmp.eq.s32.totalorder %s176, 0
      %s179 = sadd.s32 %s178, 1
      %s180 = scalar_select %p177, %s178, %s179
      %p183 = pneg %p177
      %p184 = scmp.eq.s32.totalorder %s16, 1
      %p185 = por %p183, %p184
      %p186 = scmp.ne.s32.totalorder %s178, %s181
      %p187 = scmp.eq.s32.totalorder %s16, 0
      %p188 = por %p186, %p187
      %p189 = scmp.ne.s32.totalorder %s178, %s181
      %p190 = scmp.eq.s32.totalorder %s21, 1
      %p191 = por %p189, %p190
      %p192 = scmp.ne.s32.totalorder %s181, %s182
      %p193 = scmp.eq.s32.totalorder %s21, 0
      %p194 = por %p192, %p193
      %p195 = scmp.ne.s32.totalorder %s181, %s182
      %p196 = scmp.eq.s32.totalorder %s22, 1
      %p197 = por %p195, %p196
      %p199 = scmp.ne.s32.totalorder %s182, %s198
      %p200 = scmp.eq.s32.totalorder %s22, 0
      %p201 = por %p199, %p200
      %p202 = scmp.le.s32.totalorder 1, %s16
      %p203 = scmp.lt.s32.totalorder %s16, 3
      %p204 = pnand %p202, %p203
      %p205 = pneg %p204
      // Predicated region
      $region9: #{tpu_custom_call.1} parent=5 // pred_check
        _
      $region10: #{tpu_custom_call.1} parent=5 // pred_check_branch
        %207 = sbr.rel (%p204) target = $region12
      $region11: #{tpu_custom_call.1} parent=5 // pred_region
        %s208 = ssub.s32 %s16, 1
        // Predicated region
        $region13: #{tpu_custom_call.1} parent=11 // pred_check
          %p209 = pneg %p63
        $region14: #{tpu_custom_call.1} parent=11 // pred_check_branch
          %211 = sbr.rel (%p209) target = $region16
        $region15: #{tpu_custom_call.1} parent=11 // pred_region
          _
        $region16: #{tpu_custom_call.1} parent=11 // pred_fallthru
          _
        // Predicated region
        $region17: #{tpu_custom_call.1} parent=11 // pred_check
          %p212 = pneg %p84
        $region18: #{tpu_custom_call.1} parent=11 // pred_check_branch
          %214 = sbr.rel (%p212) target = $region20
        $region19: #{tpu_custom_call.1} parent=11 // pred_region
          _
        $region20: #{tpu_custom_call.1} parent=11 // pred_fallthru
          _
        // Predicated region
        $region21: #{tpu_custom_call.1} parent=11 // pred_check
          %p215 = pneg %p105
        $region22: #{tpu_custom_call.1} parent=11 // pred_check_branch
          %217 = sbr.rel (%p215) target = $region24
        $region23: #{tpu_custom_call.1} parent=11 // pred_region
          _
        $region24: #{tpu_custom_call.1} parent=11 // pred_fallthru
          _
        // Predicated region
        $region25: #{tpu_custom_call.1} parent=11 // pred_check
          %p218 = pneg %p126
        $region26: #{tpu_custom_call.1} parent=11 // pred_check_branch
          %220 = sbr.rel (%p218) target = $region28
        $region27: #{tpu_custom_call.1} parent=11 // pred_region
          _
        $region28: #{tpu_custom_call.1} parent=11 // pred_fallthru
          _
        // Predicated region
        $region29: #{tpu_custom_call.1} parent=11 // pred_check
          %p221 = pneg %p147
        $region30: #{tpu_custom_call.1} parent=11 // pred_check_branch
          %223 = sbr.rel (%p221) target = $region32
        $region31: #{tpu_custom_call.1} parent=11 // pred_region
          _
        $region32: #{tpu_custom_call.1} parent=11 // pred_fallthru
          _
        // Predicated region
        $region33: #{tpu_custom_call.1} parent=11 // pred_check
          %p224 = pneg %p168
        $region34: #{tpu_custom_call.1} parent=11 // pred_check_branch
          %226 = sbr.rel (%p224) target = $region36
        $region35: #{tpu_custom_call.1} parent=11 // pred_region
          _
        $region36: #{tpu_custom_call.1} parent=11 // pred_fallthru
          _
      $region12: #{tpu_custom_call.1} parent=5 // pred_fallthru
        _
      %p227 = scmp.lt.s32.totalorder %s16, 2
      // Predicated region
      $region37: #{tpu_custom_call.1} parent=5 // pred_check
        %p228 = pneg %p227
      $region38: #{tpu_custom_call.1} parent=5 // pred_check_branch
        %230 = sbr.rel (%p228) target = $region40
      $region39: #{tpu_custom_call.1} parent=5 // pred_region
        // Predicated region
        $region41: #{tpu_custom_call.1} parent=39 // pred_check
          %p231 = pneg %p36
        $region42: #{tpu_custom_call.1} parent=39 // pred_check_branch
          %233 = sbr.rel (%p231) target = $region44
        $region43: #{tpu_custom_call.1} parent=39 // pred_region
          %p234 = scmp.lt.s32.totalorder %s16, 1
          %s235 = scalar_select %p234, %s16, 1
          %s236 = smul.addr %s235, 2
          %s237 = smul.addr %s236, 4
          %s238 = scalar_lea.vmem %s0, %s237
        $region44: #{tpu_custom_call.1} parent=39 // pred_fallthru
          _
      $region40: #{tpu_custom_call.1} parent=5 // pred_fallthru
        _
      %p239 = scmp.le.s32.totalorder 1, %s16
      %p240 = scmp.lt.s32.totalorder %s16, 3
      %p241 = pnand %p239, %p240
      %p242 = pneg %p241
      // Predicated region
      $region45: #{tpu_custom_call.1} parent=5 // pred_check
        _
      $region46: #{tpu_custom_call.1} parent=5 // pred_check_branch
        %244 = sbr.rel (%p241) target = $region48
      $region47: #{tpu_custom_call.1} parent=5 // pred_region
        %s245 = ssub.s32 %s16, 1
        %p246 = scmp.lt.s32.totalorder %s21, 1
        %s247 = scalar_select %p246, %s21, 1
        %s248 = smul.addr %s247, 2
        %s249 = smul.addr %s248, 4
        %s250 = scalar_lea.vmem %s0, %s249
        %p251 = pneg %p42
        %p252 = pneg %p39
        %p253 = pneg %p63
        %p254 = pneg %p60
        %p255 = pneg %p84
        %p256 = pneg %p81
        %p257 = pneg %p105
        %p258 = pneg %p102
        %p259 = pneg %p126
        %p260 = pneg %p123
        %p261 = pneg %p147
        %p262 = pneg %p144
        %p263 = pneg %p168
        %p264 = pneg %p165
        %p265 = pneg %p194
        %p266 = pneg %p191
        %s267 = sand.u32 %s181, 1
        %s268 = scalar_lea.sflag [#allocation3], %s267
        %s269 = sand.u32 %s181, 1
        %s270 = smul.addr %s269, 8
        %s271 = scalar_lea.vmem [#allocation2], %s270
        %p272 = scmp.lt.s32.totalorder %s21, 1
        %s273 = scalar_select %p272, %s21, 1
        %s274 = smul.addr %s273, 2
        %s275 = smul.addr %s274, 4
        %s276 = scalar_lea.vmem %s0, %s275
        %v277 = vld [vmem:[%s276] sm:$0xff]
        %v278 = vld [vmem:[%s1] sm:$0xff]
        %v279 = vld [vmem:[%s1 + $0x8] sm:$0xff]
        %281 = vset.pattern.permute.xlu0 0
        %282 = vperm.xlu0 %281, %v278
        %v283 = vpop.permute.xlu0 %282
        %286 = vset.pattern.permute.xlu0 0
        %287 = vperm.xlu0 %286, %v279
        %v288 = vpop.permute.xlu0 %287
        %v291 = vperm.slane %v277, 0
        %v292 = vperm.slane %v277, 4
        %v295 = vperm.slane %v291, 0
        %v296 = vperm.slane %v292, 0
        %v297 = vmul.f32 %v283, %v295
        %v298 = vmul.f32 %v283, %v296
        %v299 = vmul.f32 %v288, %v295
        %v300 = vmul.f32 %v288, %v296
        %301 = vset.pattern.permute.xlu0 1
        %302 = vperm.xlu0 %301, %v278
        %v303 = vpop.permute.xlu0 %302
        %305 = vset.pattern.permute.xlu0 1
        %306 = vperm.xlu0 %305, %v279
        %v307 = vpop.permute.xlu0 %306
        %v309 = vperm.slane %v277, 1
        %v310 = vperm.slane %v277, 5
        %v313 = vperm.slane %v309, 1
        %v314 = vperm.slane %v310, 1
        %v315 = vmul.f32 %v303, %v313
        %v316 = vmul.f32 %v303, %v314
        %v317 = vmul.f32 %v307, %v313
        %v318 = vmul.f32 %v307, %v314
        %v319 = vadd.f32 %v297, %v315
        %v320 = vadd.f32 %v298, %v316
        %v321 = vadd.f32 %v299, %v317
        %v322 = vadd.f32 %v300, %v318
        %323 = vset.pattern.permute.xlu0 2
        %324 = vperm.xlu0 %323, %v278
        %v325 = vpop.permute.xlu0 %324
        %327 = vset.pattern.permute.xlu0 2
        %328 = vperm.xlu0 %327, %v279
        %v329 = vpop.permute.xlu0 %328
        %v331 = vperm.slane %v277, 2
        %v332 = vperm.slane %v277, 6
        %v335 = vperm.slane %v331, 2
        %v336 = vperm.slane %v332, 2
        %v337 = vmul.f32 %v325, %v335
        %v338 = vmul.f32 %v325, %v336
        %v339 = vmul.f32 %v329, %v335
        %v340 = vmul.f32 %v329, %v336
        %v341 = vadd.f32 %v319, %v337
        %v342 = vadd.f32 %v320, %v338
        %v343 = vadd.f32 %v321, %v339
        %v344 = vadd.f32 %v322, %v340
        %345 = vset.pattern.permute.xlu0 3
        %346 = vperm.xlu0 %345, %v278
        %v347 = vpop.permute.xlu0 %346
        %349 = vset.pattern.permute.xlu0 3
        %350 = vperm.xlu0 %349, %v279
        %v351 = vpop.permute.xlu0 %350
        %v353 = vperm.slane %v277, 3
        %v354 = vperm.slane %v277, 7
        %v357 = vperm.slane %v353, 3
        %v358 = vperm.slane %v354, 3
        %v359 = vmul.f32 %v347, %v357
        %v360 = vmul.f32 %v347, %v358
        %v361 = vmul.f32 %v351, %v357
        %v362 = vmul.f32 %v351, %v358
        %v363 = vadd.f32 %v341, %v359
        %v364 = vadd.f32 %v342, %v360
        %v365 = vadd.f32 %v343, %v361
        %v366 = vadd.f32 %v344, %v362
        %v367 = vld [vmem:[%s2] sm:$0xff]
        %v368 = vld [vmem:[%s2 + $0x8] sm:$0xff]
        %370 = vset.pattern.permute.xlu0 0
        %371 = vperm.xlu0 %370, %v367
        %v372 = vpop.permute.xlu0 %371
        %375 = vset.pattern.permute.xlu0 0
        %376 = vperm.xlu0 %375, %v368
        %v377 = vpop.permute.xlu0 %376
        %v379 = vadd.f32 %v363, %v372
        %v380 = vadd.f32 %v364, %v372
        %v381 = vadd.f32 %v365, %v377
        %v382 = vadd.f32 %v366, %v377
        %vm383 = vcmp.ge.f32.partialorder %v379, 0.0
        %vm384 = vcmp.ge.f32.partialorder %v380, 0.0
        %vm385 = vcmp.ge.f32.partialorder %v381, 0.0
        %vm386 = vcmp.ge.f32.partialorder %v382, 0.0
        %v387 = vmul.f32 %v379, 0.01
        %v388 = vmul.f32 %v380, 0.01
        %v389 = vmul.f32 %v381, 0.01
        %v390 = vmul.f32 %v382, 0.01
        %v391 = vsel %vm383, %v379, %v387
        %v392 = vsel %vm384, %v380, %v388
        %v393 = vsel %vm385, %v381, %v389
        %v394 = vsel %vm386, %v382, %v390
        %v395 = vld [vmem:[%s3] sm:$0xff]
        %v396 = vld [vmem:[%s3 + $0x8] sm:$0xff]
        %v397 = vld [vmem:[%s4] sm:$0xff]
        %v398 = vld [vmem:[%s4 + $0x8] sm:$0xff]
        %400 = vset.pattern.permute.xlu0 0
        %401 = vperm.xlu0 %400, %v397
        %v402 = vpop.permute.xlu0 %401
        %405 = vset.pattern.permute.xlu0 0
        %406 = vperm.xlu0 %405, %v398
        %v407 = vpop.permute.xlu0 %406
        %vm409 = vcmask 130048
        %v411 = vsel %vm409, %v395, 0
        %v414 = vsel %vm409, %v396, 0
        %416 = vmatpush.msra.mxu0 0.0
        %417 = vmatpush.msra.mxu0 0.0
        %418 = vmatpush.msra.mxu0 0.0
        %419 = vmatpush.msra.mxu0 0.0
        %420 = vmatpush.msra.mxu0 0.0
        %421 = vmatpush.msra.mxu0 0.0
        %422 = vmatpush.msra.mxu0 0.0
        %423 = vmatpush.msra.mxu0 0.0
        %424 = vmatpush.msra.mxu0 0.0
        %425 = vmatpush.msra.mxu0 0.0
        %426 = vmatpush.msra.mxu0 0.0
        %427 = vmatpush.msra.mxu0 0.0
        %428 = vmatpush.msra.mxu0 0.0
        %429 = vmatpush.msra.mxu0 0.0
        %430 = vmatpush.msra.mxu0 %v393
        %431 = vmatpush.msra.mxu0 %v391
        %432 = vmatmul.f32.gmra.mxu0 %v411
        %v433 = vpop.f32.mrf.mxu0
        %v434 = vadd.f32 %v402, %v433
        %435 = vmatmul.f32.gmra.mxu0 %v414
        %v436 = vpop.f32.mrf.mxu0
        %v437 = vadd.f32 %v407, %v436
        %438 = vdwg.mxu0
        %439 = vmatpush.msra.mxu0 0.0
        %440 = vmatpush.msra.mxu0 0.0
        %441 = vmatpush.msra.mxu0 0.0
        %442 = vmatpush.msra.mxu0 0.0
        %443 = vmatpush.msra.mxu0 0.0
        %444 = vmatpush.msra.mxu0 0.0
        %445 = vmatpush.msra.mxu0 0.0
        %446 = vmatpush.msra.mxu0 0.0
        %447 = vmatpush.msra.mxu0 0.0
        %448 = vmatpush.msra.mxu0 0.0
        %449 = vmatpush.msra.mxu0 0.0
        %450 = vmatpush.msra.mxu0 0.0
        %451 = vmatpush.msra.mxu0 0.0
        %452 = vmatpush.msra.mxu0 0.0
        %453 = vmatpush.msra.mxu0 %v394
        %454 = vmatpush.msra.mxu0 %v392
        %455 = vmatmul.f32.gmra.mxu0 %v411
        %v456 = vpop.f32.mrf.mxu0
        %v457 = vadd.f32 %v402, %v456
        %458 = vmatmul.f32.gmra.mxu0 %v414
        %v459 = vpop.f32.mrf.mxu0
        %v460 = vadd.f32 %v407, %v459
        %461 = vdwg.mxu0
        %vm462 = vcmp.ge.f32.partialorder %v434, 0.0
        %vm463 = vcmp.ge.f32.partialorder %v457, 0.0
        %vm464 = vcmp.ge.f32.partialorder %v437, 0.0
        %vm465 = vcmp.ge.f32.partialorder %v460, 0.0
        %v466 = vmul.f32 %v434, 0.01
        %v467 = vmul.f32 %v457, 0.01
        %v468 = vmul.f32 %v437, 0.01
        %v469 = vmul.f32 %v460, 0.01
        %v470 = vsel %vm462, %v434, %v466
        %v471 = vsel %vm463, %v457, %v467
        %v472 = vsel %vm464, %v437, %v468
        %v473 = vsel %vm465, %v460, %v469
        %v474 = vld [vmem:[%s5] sm:$0xff]
        %v475 = vld [vmem:[%s5 + $0x8] sm:$0xff]
        %v477 = vsel %vm409, %v474, 0
        %v480 = vsel %vm409, %v475, 0
        %482 = vmatpush.msra.mxu0 0.0
        %483 = vmatpush.msra.mxu0 0.0
        %484 = vmatpush.msra.mxu0 0.0
        %485 = vmatpush.msra.mxu0 0.0
        %486 = vmatpush.msra.mxu0 0.0
        %487 = vmatpush.msra.mxu0 0.0
        %488 = vmatpush.msra.mxu0 0.0
        %489 = vmatpush.msra.mxu0 0.0
        %490 = vmatpush.msra.mxu0 0.0
        %491 = vmatpush.msra.mxu0 0.0
        %492 = vmatpush.msra.mxu0 0.0
        %493 = vmatpush.msra.mxu0 0.0
        %494 = vmatpush.msra.mxu0 0.0
        %495 = vmatpush.msra.mxu0 0.0
        %496 = vmatpush.msra.mxu0 %v472
        %497 = vmatpush.msra.mxu0 %v470
        %498 = vmatmul.f32.gmra.mxu0 %v477
        %v499 = vpop.f32.mrf.mxu0
        %v500 = vadd.f32 0.0, %v499
        %501 = vmatmul.f32.gmra.mxu0 %v480
        %v502 = vpop.f32.mrf.mxu0
        %v503 = vadd.f32 0.0, %v502
        %504 = vdwg.mxu0
        %505 = vmatpush.msra.mxu0 0.0
        %506 = vmatpush.msra.mxu0 0.0
        %507 = vmatpush.msra.mxu0 0.0
        %508 = vmatpush.msra.mxu0 0.0
        %509 = vmatpush.msra.mxu0 0.0
        %510 = vmatpush.msra.mxu0 0.0
        %511 = vmatpush.msra.mxu0 0.0
        %512 = vmatpush.msra.mxu0 0.0
        %513 = vmatpush.msra.mxu0 0.0
        %514 = vmatpush.msra.mxu0 0.0
        %515 = vmatpush.msra.mxu0 0.0
        %516 = vmatpush.msra.mxu0 0.0
        %517 = vmatpush.msra.mxu0 0.0
        %518 = vmatpush.msra.mxu0 0.0
        %519 = vmatpush.msra.mxu0 %v473
        %520 = vmatpush.msra.mxu0 %v471
        %521 = vmatmul.f32.gmra.mxu0 %v477
        %v522 = vpop.f32.mrf.mxu0
        %v523 = vadd.f32 0.0, %v522
        %524 = vmatmul.f32.gmra.mxu0 %v480
        %v525 = vpop.f32.mrf.mxu0
        %v526 = vadd.f32 0.0, %v525
        %527 = vdwg.mxu0
        %v528 = vadd.f32 %v391, %v500
        %v529 = vadd.f32 %v392, %v523
        %v530 = vadd.f32 %v393, %v503
        %v531 = vadd.f32 %v394, %v526
        %v532 = vld [vmem:[%s6] sm:$0xff]
        %v533 = vld [vmem:[%s6 + $0x8] sm:$0xff]
        %535 = vset.pattern.permute.xlu0 0
        %536 = vperm.xlu0 %535, %v532
        %v537 = vpop.permute.xlu0 %536
        %540 = vset.pattern.permute.xlu0 0
        %541 = vperm.xlu0 %540, %v533
        %v542 = vpop.permute.xlu0 %541
        %v544 = vadd.f32 %v528, %v537
        %v545 = vadd.f32 %v529, %v537
        %v546 = vadd.f32 %v530, %v542
        %v547 = vadd.f32 %v531, %v542
        %v548 = vand.u32 2147483647, %v544
        %v549 = vand.u32 2147483647, %v545
        %v550 = vand.u32 2147483647, %v546
        %v551 = vand.u32 2147483647, %v547
        %v552 = vadd.f32 %v548, %v549
        %553 = vadd.xlane.f32.xlu0 %v552
        %v554 = vpop.xlane.xlu0 %553
        %v555 = vadd.f32 %v550, %v551
        %556 = vadd.xlane.f32.xlu0 %v555
        %v557 = vpop.xlane.xlu0 %556
        %v558 = vadd.f32 %v554, 1e-06
        %v559 = vadd.f32 %v557, 1e-06
        %v560 = vrcp.pop %v558
        %v561 = vmul.f32 %v558, %v560
        %v562 = vsub.f32 1.0, %v561
        %v563 = vmul.f32 %v560, %v562
        %v564 = vadd.f32 %v560, %v563
        %vm565 = vweird.f32 %v558
        %vm566 = vweird.f32 %v560
        %vm567 = vmor %vm565, %vm566
        %v568 = vsel %vm567, %v560, %v564
        %v569 = vand.u32 2147483647, %v558
        %vm570 = vcmp.eq.f32.partialorder %v569, 8.507059e+37
        %v571 = vand.u32 %v558, 2147483648
        %v572 = vor.u32 1.1754944e-38, %v571
        %v573 = vsel %vm570, %v572, %v568
        %v574 = vmul.f32 %v544, %v573
        %v575 = vmul.f32 %v545, %v573
        %v576 = vrcp.pop %v559
        %v577 = vmul.f32 %v559, %v576
        %v578 = vsub.f32 1.0, %v577
        %v579 = vmul.f32 %v576, %v578
        %v580 = vadd.f32 %v576, %v579
        %vm581 = vweird.f32 %v559
        %vm582 = vweird.f32 %v576
        %vm583 = vmor %vm581, %vm582
        %v584 = vsel %vm583, %v576, %v580
        %v585 = vand.u32 2147483647, %v559
        %vm586 = vcmp.eq.f32.partialorder %v585, 8.507059e+37
        %v587 = vand.u32 %v559, 2147483648
        %v588 = vor.u32 1.1754944e-38, %v587
        %v589 = vsel %vm586, %v588, %v584
        %v590 = vmul.f32 %v546, %v589
        %v591 = vmul.f32 %v547, %v589
        %592 = vmatpush.xpose.msra.mxu0 0.0
        %593 = vmatpush.xpose.msra.mxu0 0.0
        %594 = vmatpush.xpose.msra.mxu0 0.0
        %595 = vmatpush.xpose.msra.mxu0 0.0
        %596 = vmatpush.xpose.msra.mxu0 0.0
        %597 = vmatpush.xpose.msra.mxu0 0.0
        %598 = vmatpush.xpose.msra.mxu0 0.0
        %599 = vmatpush.xpose.msra.mxu0 0.0
        %600 = vmatpush.xpose.msra.mxu0 0.0
        %601 = vmatpush.xpose.msra.mxu0 0.0
        %602 = vmatpush.xpose.msra.mxu0 0.0
        %603 = vmatpush.xpose.msra.mxu0 0.0
        %604 = vmatpush.xpose.msra.mxu0 0.0
        %605 = vmatpush.xpose.msra.mxu0 0.0
        %606 = vmatpush.xpose.msra.mxu0 %v590
        %607 = vmatpush.xpose.msra.mxu0 %v574
        %608 = vmatmul.f32.gmra.mxu0 %v574
        %v609 = vpop.f32.mrf.mxu0
        %v610 = vadd.f32 0.0, %v609
        %611 = vmatmul.f32.gmra.mxu0 %v590
        %v612 = vpop.f32.mrf.mxu0
        %v613 = vadd.f32 0.0, %v612
        %614 = vdwg.mxu0
        %615 = vmatpush.xpose.msra.mxu0 0.0
        %616 = vmatpush.xpose.msra.mxu0 0.0
        %617 = vmatpush.xpose.msra.mxu0 0.0
        %618 = vmatpush.xpose.msra.mxu0 0.0
        %619 = vmatpush.xpose.msra.mxu0 0.0
        %620 = vmatpush.xpose.msra.mxu0 0.0
        %621 = vmatpush.xpose.msra.mxu0 0.0
        %622 = vmatpush.xpose.msra.mxu0 0.0
        %623 = vmatpush.xpose.msra.mxu0 0.0
        %624 = vmatpush.xpose.msra.mxu0 0.0
        %625 = vmatpush.xpose.msra.mxu0 0.0
        %626 = vmatpush.xpose.msra.mxu0 0.0
        %627 = vmatpush.xpose.msra.mxu0 0.0
        %628 = vmatpush.xpose.msra.mxu0 0.0
        %629 = vmatpush.xpose.msra.mxu0 %v591
        %630 = vmatpush.xpose.msra.mxu0 %v575
        %631 = vmatmul.f32.gmra.mxu0 %v575
        %v632 = vpop.f32.mrf.mxu0
        %v633 = vadd.f32 %v610, %v632
        %634 = vmatmul.f32.gmra.mxu0 %v591
        %v635 = vpop.f32.mrf.mxu0
        %v636 = vadd.f32 %v613, %v635
        %637 = vdwg.mxu0
        %v638 = vlaneseq
        %v639 = vshrl.u32 %v638, 7
        %v640 = vadd.s32 %v639, 8
        %v641 = vlaneseq
        %v642 = vand.u32 %v641, 127
        %vm643 = vcmp.eq.s32.totalorder %v639, %v642
        %vm644 = vcmp.eq.s32.totalorder %v640, %v642
        %v645 = vsel %vm643, 1, 0
        %v646 = vsel %vm644, 1, 0
        %v647 = vcvt.s32.f32 %v645
        %v648 = vcvt.s32.f32 %v646
        %650 = vset.pattern.permute.xlu0 0
        %651 = vperm.xlu0 %650, %v633
        %v652 = vpop.permute.xlu0 %651
        %v654 = vrcp.pop %v652
        %v655 = vmul.f32 %v652, %v654
        %v656 = vsub.f32 1.0, %v655
        %v657 = vmul.f32 %v654, %v656
        %v658 = vadd.f32 %v654, %v657
        %vm659 = vweird.f32 %v652
        %vm660 = vweird.f32 %v654
        %vm661 = vmor %vm659, %vm660
        %v662 = vsel %vm661, %v654, %v658
        %v663 = vand.u32 2147483647, %v652
        %vm664 = vcmp.eq.f32.partialorder %v663, 8.507059e+37
        %v665 = vand.u32 %v652, 2147483648
        %v666 = vor.u32 1.1754944e-38, %v665
        %v667 = vsel %vm664, %v666, %v662
        %v668 = vmul.f32 %v633, %v667
        %v669 = vmul.f32 %v647, %v667
        %vm670 = vcmp.eq.s32.totalorder %v639, 0
        %vm671 = vcmp.eq.s32.totalorder %v640, 0
        %673 = vset.pattern.permute.xlu0 0
        %674 = vperm.xlu0 %673, %v636
        %v675 = vpop.permute.xlu0 %674
        %v677 = vperm.slane %v668, 0
        %v678 = vmul.f32 %v652, %v677
        %v679 = vmul.f32 %v675, %v677
        %v680 = vsub.f32 %v633, %v678
        %v681 = vsub.f32 %v636, %v679
        %v682 = vsel %vm670, %v677, %v680
        %v683 = vsel %vm671, %v677, %v681
        %v684 = vperm.slane %v669, 0
        %v685 = vmul.f32 %v652, %v684
        %v686 = vmul.f32 %v675, %v684
        %v687 = vsub.f32 %v647, %v685
        %v688 = vsub.f32 %v648, %v686
        %v689 = vsel %vm670, %v684, %v687
        %v690 = vsel %vm671, %v684, %v688
        %692 = vset.pattern.permute.xlu0 1
        %693 = vperm.xlu0 %692, %v682
        %v694 = vpop.permute.xlu0 %693
        %v696 = vrcp.pop %v694
        %v697 = vmul.f32 %v694, %v696
        %v698 = vsub.f32 1.0, %v697
        %v699 = vmul.f32 %v696, %v698
        %v700 = vadd.f32 %v696, %v699
        %vm701 = vweird.f32 %v694
        %vm702 = vweird.f32 %v696
        %vm703 = vmor %vm701, %vm702
        %v704 = vsel %vm703, %v696, %v700
        %v705 = vand.u32 2147483647, %v694
        %vm706 = vcmp.eq.f32.partialorder %v705, 8.507059e+37
        %v707 = vand.u32 %v694, 2147483648
        %v708 = vor.u32 1.1754944e-38, %v707
        %v709 = vsel %vm706, %v708, %v704
        %v710 = vmul.f32 %v682, %v709
        %v711 = vmul.f32 %v689, %v709
        %vm712 = vcmp.eq.s32.totalorder %v639, 1
        %vm713 = vcmp.eq.s32.totalorder %v640, 1
        %715 = vset.pattern.permute.xlu0 1
        %716 = vperm.xlu0 %715, %v683
        %v717 = vpop.permute.xlu0 %716
        %v719 = vperm.slane %v710, 1
        %v720 = vmul.f32 %v694, %v719
        %v721 = vmul.f32 %v717, %v719
        %v722 = vsub.f32 %v682, %v720
        %v723 = vsub.f32 %v683, %v721
        %v724 = vsel %vm712, %v719, %v722
        %v725 = vsel %vm713, %v719, %v723
        %v726 = vperm.slane %v711, 1
        %v727 = vmul.f32 %v694, %v726
        %v728 = vmul.f32 %v717, %v726
        %v729 = vsub.f32 %v689, %v727
        %v730 = vsub.f32 %v690, %v728
        %v731 = vsel %vm712, %v726, %v729
        %v732 = vsel %vm713, %v726, %v730
        %734 = vset.pattern.permute.xlu0 2
        %735 = vperm.xlu0 %734, %v724
        %v736 = vpop.permute.xlu0 %735
        %v738 = vrcp.pop %v736
        %v739 = vmul.f32 %v736, %v738
        %v740 = vsub.f32 1.0, %v739
        %v741 = vmul.f32 %v738, %v740
        %v742 = vadd.f32 %v738, %v741
        %vm743 = vweird.f32 %v736
        %vm744 = vweird.f32 %v738
        %vm745 = vmor %vm743, %vm744
        %v746 = vsel %vm745, %v738, %v742
        %v747 = vand.u32 2147483647, %v736
        %vm748 = vcmp.eq.f32.partialorder %v747, 8.507059e+37
        %v749 = vand.u32 %v736, 2147483648
        %v750 = vor.u32 1.1754944e-38, %v749
        %v751 = vsel %vm748, %v750, %v746
        %v752 = vmul.f32 %v724, %v751
        %v753 = vmul.f32 %v731, %v751
        %vm754 = vcmp.eq.s32.totalorder %v639, 2
        %vm755 = vcmp.eq.s32.totalorder %v640, 2
        %757 = vset.pattern.permute.xlu0 2
        %758 = vperm.xlu0 %757, %v725
        %v759 = vpop.permute.xlu0 %758
        %v761 = vperm.slane %v752, 2
        %v762 = vmul.f32 %v736, %v761
        %v763 = vmul.f32 %v759, %v761
        %v764 = vsub.f32 %v724, %v762
        %v765 = vsub.f32 %v725, %v763
        %v766 = vsel %vm754, %v761, %v764
        %v767 = vsel %vm755, %v761, %v765
        %v768 = vperm.slane %v753, 2
        %v769 = vmul.f32 %v736, %v768
        %v770 = vmul.f32 %v759, %v768
        %v771 = vsub.f32 %v731, %v769
        %v772 = vsub.f32 %v732, %v770
        %v773 = vsel %vm754, %v768, %v771
        %v774 = vsel %vm755, %v768, %v772
        %776 = vset.pattern.permute.xlu0 3
        %777 = vperm.xlu0 %776, %v766
        %v778 = vpop.permute.xlu0 %777
        %v780 = vrcp.pop %v778
        %v781 = vmul.f32 %v778, %v780
        %v782 = vsub.f32 1.0, %v781
        %v783 = vmul.f32 %v780, %v782
        %v784 = vadd.f32 %v780, %v783
        %vm785 = vweird.f32 %v778
        %vm786 = vweird.f32 %v780
        %vm787 = vmor %vm785, %vm786
        %v788 = vsel %vm787, %v780, %v784
        %v789 = vand.u32 2147483647, %v778
        %vm790 = vcmp.eq.f32.partialorder %v789, 8.507059e+37
        %v791 = vand.u32 %v778, 2147483648
        %v792 = vor.u32 1.1754944e-38, %v791
        %v793 = vsel %vm790, %v792, %v788
        %v794 = vmul.f32 %v766, %v793
        %v795 = vmul.f32 %v773, %v793
        %vm796 = vcmp.eq.s32.totalorder %v639, 3
        %vm797 = vcmp.eq.s32.totalorder %v640, 3
        %799 = vset.pattern.permute.xlu0 3
        %800 = vperm.xlu0 %799, %v767
        %v801 = vpop.permute.xlu0 %800
        %v803 = vperm.slane %v794, 3
        %v804 = vmul.f32 %v778, %v803
        %v805 = vmul.f32 %v801, %v803
        %v806 = vsub.f32 %v766, %v804
        %v807 = vsub.f32 %v767, %v805
        %v808 = vsel %vm796, %v803, %v806
        %v809 = vsel %vm797, %v803, %v807
        %v810 = vperm.slane %v795, 3
        %v811 = vmul.f32 %v778, %v810
        %v812 = vmul.f32 %v801, %v810
        %v813 = vsub.f32 %v773, %v811
        %v814 = vsub.f32 %v774, %v812
        %v815 = vsel %vm796, %v810, %v813
        %v816 = vsel %vm797, %v810, %v814
        %818 = vset.pattern.permute.xlu0 4
        %819 = vperm.xlu0 %818, %v808
        %v820 = vpop.permute.xlu0 %819
        %v822 = vrcp.pop %v820
        %v823 = vmul.f32 %v820, %v822
        %v824 = vsub.f32 1.0, %v823
        %v825 = vmul.f32 %v822, %v824
        %v826 = vadd.f32 %v822, %v825
        %vm827 = vweird.f32 %v820
        %vm828 = vweird.f32 %v822
        %vm829 = vmor %vm827, %vm828
        %v830 = vsel %vm829, %v822, %v826
        %v831 = vand.u32 2147483647, %v820
        %vm832 = vcmp.eq.f32.partialorder %v831, 8.507059e+37
        %v833 = vand.u32 %v820, 2147483648
        %v834 = vor.u32 1.1754944e-38, %v833
        %v835 = vsel %vm832, %v834, %v830
        %v836 = vmul.f32 %v808, %v835
        %v837 = vmul.f32 %v815, %v835
        %vm838 = vcmp.eq.s32.totalorder %v639, 4
        %vm839 = vcmp.eq.s32.totalorder %v640, 4
        %841 = vset.pattern.permute.xlu0 4
        %842 = vperm.xlu0 %841, %v809
        %v843 = vpop.permute.xlu0 %842
        %v845 = vperm.slane %v836, 4
        %v846 = vmul.f32 %v820, %v845
        %v847 = vmul.f32 %v843, %v845
        %v848 = vsub.f32 %v808, %v846
        %v849 = vsub.f32 %v809, %v847
        %v850 = vsel %vm838, %v845, %v848
        %v851 = vsel %vm839, %v845, %v849
        %v852 = vperm.slane %v837, 4
        %v853 = vmul.f32 %v820, %v852
        %v854 = vmul.f32 %v843, %v852
        %v855 = vsub.f32 %v815, %v853
        %v856 = vsub.f32 %v816, %v854
        %v857 = vsel %vm838, %v852, %v855
        %v858 = vsel %vm839, %v852, %v856
        %860 = vset.pattern.permute.xlu0 5
        %861 = vperm.xlu0 %860, %v850
        %v862 = vpop.permute.xlu0 %861
        %v864 = vrcp.pop %v862
        %v865 = vmul.f32 %v862, %v864
        %v866 = vsub.f32 1.0, %v865
        %v867 = vmul.f32 %v864, %v866
        %v868 = vadd.f32 %v864, %v867
        %vm869 = vweird.f32 %v862
        %vm870 = vweird.f32 %v864
        %vm871 = vmor %vm869, %vm870
        %v872 = vsel %vm871, %v864, %v868
        %v873 = vand.u32 2147483647, %v862
        %vm874 = vcmp.eq.f32.partialorder %v873, 8.507059e+37
        %v875 = vand.u32 %v862, 2147483648
        %v876 = vor.u32 1.1754944e-38, %v875
        %v877 = vsel %vm874, %v876, %v872
        %v878 = vmul.f32 %v850, %v877
        %v879 = vmul.f32 %v857, %v877
        %vm880 = vcmp.eq.s32.totalorder %v639, 5
        %vm881 = vcmp.eq.s32.totalorder %v640, 5
        %883 = vset.pattern.permute.xlu0 5
        %884 = vperm.xlu0 %883, %v851
        %v885 = vpop.permute.xlu0 %884
        %v887 = vperm.slane %v878, 5
        %v888 = vmul.f32 %v862, %v887
        %v889 = vmul.f32 %v885, %v887
        %v890 = vsub.f32 %v850, %v888
        %v891 = vsub.f32 %v851, %v889
        %v892 = vsel %vm880, %v887, %v890
        %v893 = vsel %vm881, %v887, %v891
        %v894 = vperm.slane %v879, 5
        %v895 = vmul.f32 %v862, %v894
        %v896 = vmul.f32 %v885, %v894
        %v897 = vsub.f32 %v857, %v895
        %v898 = vsub.f32 %v858, %v896
        %v899 = vsel %vm880, %v894, %v897
        %v900 = vsel %vm881, %v894, %v898
        %902 = vset.pattern.permute.xlu0 6
        %903 = vperm.xlu0 %902, %v892
        %v904 = vpop.permute.xlu0 %903
        %v906 = vrcp.pop %v904
        %v907 = vmul.f32 %v904, %v906
        %v908 = vsub.f32 1.0, %v907
        %v909 = vmul.f32 %v906, %v908
        %v910 = vadd.f32 %v906, %v909
        %vm911 = vweird.f32 %v904
        %vm912 = vweird.f32 %v906
        %vm913 = vmor %vm911, %vm912
        %v914 = vsel %vm913, %v906, %v910
        %v915 = vand.u32 2147483647, %v904
        %vm916 = vcmp.eq.f32.partialorder %v915, 8.507059e+37
        %v917 = vand.u32 %v904, 2147483648
        %v918 = vor.u32 1.1754944e-38, %v917
        %v919 = vsel %vm916, %v918, %v914
        %v920 = vmul.f32 %v892, %v919
        %v921 = vmul.f32 %v899, %v919
        %vm922 = vcmp.eq.s32.totalorder %v639, 6
        %vm923 = vcmp.eq.s32.totalorder %v640, 6
        %925 = vset.pattern.permute.xlu0 6
        %926 = vperm.xlu0 %925, %v893
        %v927 = vpop.permute.xlu0 %926
        %v929 = vperm.slane %v920, 6
        %v930 = vmul.f32 %v904, %v929
        %v931 = vmul.f32 %v927, %v929
        %v932 = vsub.f32 %v892, %v930
        %v933 = vsub.f32 %v893, %v931
        %v934 = vsel %vm922, %v929, %v932
        %v935 = vsel %vm923, %v929, %v933
        %v936 = vperm.slane %v921, 6
        %v937 = vmul.f32 %v904, %v936
        %v938 = vmul.f32 %v927, %v936
        %v939 = vsub.f32 %v899, %v937
        %v940 = vsub.f32 %v900, %v938
        %v941 = vsel %vm922, %v936, %v939
        %v942 = vsel %vm923, %v936, %v940
        %944 = vset.pattern.permute.xlu0 7
        %945 = vperm.xlu0 %944, %v934
        %v946 = vpop.permute.xlu0 %945
        %v948 = vrcp.pop %v946
        %v949 = vmul.f32 %v946, %v948
        %v950 = vsub.f32 1.0, %v949
        %v951 = vmul.f32 %v948, %v950
        %v952 = vadd.f32 %v948, %v951
        %vm953 = vweird.f32 %v946
        %vm954 = vweird.f32 %v948
        %vm955 = vmor %vm953, %vm954
        %v956 = vsel %vm955, %v948, %v952
        %v957 = vand.u32 2147483647, %v946
        %vm958 = vcmp.eq.f32.partialorder %v957, 8.507059e+37
        %v959 = vand.u32 %v946, 2147483648
        %v960 = vor.u32 1.1754944e-38, %v959
        %v961 = vsel %vm958, %v960, %v956
        %v962 = vmul.f32 %v934, %v961
        %v963 = vmul.f32 %v941, %v961
        %vm964 = vcmp.eq.s32.totalorder %v639, 7
        %vm965 = vcmp.eq.s32.totalorder %v640, 7
        %967 = vset.pattern.permute.xlu0 7
        %968 = vperm.xlu0 %967, %v935
        %v969 = vpop.permute.xlu0 %968
        %v971 = vperm.slane %v962, 7
        %v972 = vmul.f32 %v946, %v971
        %v973 = vmul.f32 %v969, %v971
        %v974 = vsub.f32 %v934, %v972
        %v975 = vsub.f32 %v935, %v973
        %v976 = vsel %vm964, %v971, %v974
        %v977 = vsel %vm965, %v971, %v975
        %v978 = vperm.slane %v963, 7
        %v979 = vmul.f32 %v946, %v978
        %v980 = vmul.f32 %v969, %v978
        %v981 = vsub.f32 %v941, %v979
        %v982 = vsub.f32 %v942, %v980
        %v983 = vsel %vm964, %v978, %v981
        %v984 = vsel %vm965, %v978, %v982
        %986 = vset.pattern.permute.xlu0 8
        %987 = vperm.xlu0 %986, %v977
        %v988 = vpop.permute.xlu0 %987
        %v990 = vrcp.pop %v988
        %v991 = vmul.f32 %v988, %v990
        %v992 = vsub.f32 1.0, %v991
        %v993 = vmul.f32 %v990, %v992
        %v994 = vadd.f32 %v990, %v993
        %vm995 = vweird.f32 %v988
        %vm996 = vweird.f32 %v990
        %vm997 = vmor %vm995, %vm996
        %v998 = vsel %vm997, %v990, %v994
        %v999 = vand.u32 2147483647, %v988
        %vm1000 = vcmp.eq.f32.partialorder %v999, 8.507059e+37
        %v1001 = vand.u32 %v988, 2147483648
        %v1002 = vor.u32 1.1754944e-38, %v1001
        %v1003 = vsel %vm1000, %v1002, %v998
        %v1004 = vmul.f32 %v977, %v1003
        %v1005 = vmul.f32 %v984, %v1003
        %vm1006 = vcmp.eq.s32.totalorder %v639, 8
        %vm1007 = vcmp.eq.s32.totalorder %v640, 8
        %1009 = vset.pattern.permute.xlu0 8
        %1010 = vperm.xlu0 %1009, %v976
        %v1011 = vpop.permute.xlu0 %1010
        %v1013 = vperm.slane %v1004, 0
        %v1014 = vmul.f32 %v1011, %v1013
        %v1015 = vmul.f32 %v988, %v1013
        %v1016 = vsub.f32 %v976, %v1014
        %v1017 = vsub.f32 %v977, %v1015
        %v1018 = vsel %vm1006, %v1013, %v1016
        %v1019 = vsel %vm1007, %v1013, %v1017
        %v1020 = vperm.slane %v1005, 0
        %v1021 = vmul.f32 %v1011, %v1020
        %v1022 = vmul.f32 %v988, %v1020
        %v1023 = vsub.f32 %v983, %v1021
        %v1024 = vsub.f32 %v984, %v1022
        %v1025 = vsel %vm1006, %v1020, %v1023
        %v1026 = vsel %vm1007, %v1020, %v1024
        %1028 = vset.pattern.permute.xlu0 9
        %1029 = vperm.xlu0 %1028, %v1019
        %v1030 = vpop.permute.xlu0 %1029
        %v1032 = vrcp.pop %v1030
        %v1033 = vmul.f32 %v1030, %v1032
        %v1034 = vsub.f32 1.0, %v1033
        %v1035 = vmul.f32 %v1032, %v1034
        %v1036 = vadd.f32 %v1032, %v1035
        %vm1037 = vweird.f32 %v1030
        %vm1038 = vweird.f32 %v1032
        %vm1039 = vmor %vm1037, %vm1038
        %v1040 = vsel %vm1039, %v1032, %v1036
        %v1041 = vand.u32 2147483647, %v1030
        %vm1042 = vcmp.eq.f32.partialorder %v1041, 8.507059e+37
        %v1043 = vand.u32 %v1030, 2147483648
        %v1044 = vor.u32 1.1754944e-38, %v1043
        %v1045 = vsel %vm1042, %v1044, %v1040
        %v1046 = vmul.f32 %v1019, %v1045
        %v1047 = vmul.f32 %v1026, %v1045
        %vm1048 = vcmp.eq.s32.totalorder %v639, 9
        %vm1049 = vcmp.eq.s32.totalorder %v640, 9
        %1051 = vset.pattern.permute.xlu0 9
        %1052 = vperm.xlu0 %1051, %v1018
        %v1053 = vpop.permute.xlu0 %1052
        %v1055 = vperm.slane %v1046, 1
        %v1056 = vmul.f32 %v1053, %v1055
        %v1057 = vmul.f32 %v1030, %v1055
        %v1058 = vsub.f32 %v1018, %v1056
        %v1059 = vsub.f32 %v1019, %v1057
        %v1060 = vsel %vm1048, %v1055, %v1058
        %v1061 = vsel %vm1049, %v1055, %v1059
        %v1062 = vperm.slane %v1047, 1
        %v1063 = vmul.f32 %v1053, %v1062
        %v1064 = vmul.f32 %v1030, %v1062
        %v1065 = vsub.f32 %v1025, %v1063
        %v1066 = vsub.f32 %v1026, %v1064
        %v1067 = vsel %vm1048, %v1062, %v1065
        %v1068 = vsel %vm1049, %v1062, %v1066
        %1070 = vset.pattern.permute.xlu0 10
        %1071 = vperm.xlu0 %1070, %v1061
        %v1072 = vpop.permute.xlu0 %1071
        %v1074 = vrcp.pop %v1072
        %v1075 = vmul.f32 %v1072, %v1074
        %v1076 = vsub.f32 1.0, %v1075
        %v1077 = vmul.f32 %v1074, %v1076
        %v1078 = vadd.f32 %v1074, %v1077
        %vm1079 = vweird.f32 %v1072
        %vm1080 = vweird.f32 %v1074
        %vm1081 = vmor %vm1079, %vm1080
        %v1082 = vsel %vm1081, %v1074, %v1078
        %v1083 = vand.u32 2147483647, %v1072
        %vm1084 = vcmp.eq.f32.partialorder %v1083, 8.507059e+37
        %v1085 = vand.u32 %v1072, 2147483648
        %v1086 = vor.u32 1.1754944e-38, %v1085
        %v1087 = vsel %vm1084, %v1086, %v1082
        %v1088 = vmul.f32 %v1061, %v1087
        %v1089 = vmul.f32 %v1068, %v1087
        %vm1090 = vcmp.eq.s32.totalorder %v639, 10
        %vm1091 = vcmp.eq.s32.totalorder %v640, 10
        %1093 = vset.pattern.permute.xlu0 10
        %1094 = vperm.xlu0 %1093, %v1060
        %v1095 = vpop.permute.xlu0 %1094
        %v1097 = vperm.slane %v1088, 2
        %v1098 = vmul.f32 %v1095, %v1097
        %v1099 = vmul.f32 %v1072, %v1097
        %v1100 = vsub.f32 %v1060, %v1098
        %v1101 = vsub.f32 %v1061, %v1099
        %v1102 = vsel %vm1090, %v1097, %v1100
        %v1103 = vsel %vm1091, %v1097, %v1101
        %v1104 = vperm.slane %v1089, 2
        %v1105 = vmul.f32 %v1095, %v1104
        %v1106 = vmul.f32 %v1072, %v1104
        %v1107 = vsub.f32 %v1067, %v1105
        %v1108 = vsub.f32 %v1068, %v1106
        %v1109 = vsel %vm1090, %v1104, %v1107
        %v1110 = vsel %vm1091, %v1104, %v1108
        %1112 = vset.pattern.permute.xlu0 11
        %1113 = vperm.xlu0 %1112, %v1103
        %v1114 = vpop.permute.xlu0 %1113
        %v1116 = vrcp.pop %v1114
        %v1117 = vmul.f32 %v1114, %v1116
        %v1118 = vsub.f32 1.0, %v1117
        %v1119 = vmul.f32 %v1116, %v1118
        %v1120 = vadd.f32 %v1116, %v1119
        %vm1121 = vweird.f32 %v1114
        %vm1122 = vweird.f32 %v1116
        %vm1123 = vmor %vm1121, %vm1122
        %v1124 = vsel %vm1123, %v1116, %v1120
        %v1125 = vand.u32 2147483647, %v1114
        %vm1126 = vcmp.eq.f32.partialorder %v1125, 8.507059e+37
        %v1127 = vand.u32 %v1114, 2147483648
        %v1128 = vor.u32 1.1754944e-38, %v1127
        %v1129 = vsel %vm1126, %v1128, %v1124
        %v1130 = vmul.f32 %v1103, %v1129
        %v1131 = vmul.f32 %v1110, %v1129
        %vm1132 = vcmp.eq.s32.totalorder %v639, 11
        %vm1133 = vcmp.eq.s32.totalorder %v640, 11
        %1135 = vset.pattern.permute.xlu0 11
        %1136 = vperm.xlu0 %1135, %v1102
        %v1137 = vpop.permute.xlu0 %1136
        %v1139 = vperm.slane %v1130, 3
        %v1140 = vmul.f32 %v1137, %v1139
        %v1141 = vmul.f32 %v1114, %v1139
        %v1142 = vsub.f32 %v1102, %v1140
        %v1143 = vsub.f32 %v1103, %v1141
        %v1144 = vsel %vm1132, %v1139, %v1142
        %v1145 = vsel %vm1133, %v1139, %v1143
        %v1146 = vperm.slane %v1131, 3
        %v1147 = vmul.f32 %v1137, %v1146
        %v1148 = vmul.f32 %v1114, %v1146
        %v1149 = vsub.f32 %v1109, %v1147
        %v1150 = vsub.f32 %v1110, %v1148
        %v1151 = vsel %vm1132, %v1146, %v1149
        %v1152 = vsel %vm1133, %v1146, %v1150
        %1154 = vset.pattern.permute.xlu0 12
        %1155 = vperm.xlu0 %1154, %v1145
        %v1156 = vpop.permute.xlu0 %1155
        %v1158 = vrcp.pop %v1156
        %v1159 = vmul.f32 %v1156, %v1158
        %v1160 = vsub.f32 1.0, %v1159
        %v1161 = vmul.f32 %v1158, %v1160
        %v1162 = vadd.f32 %v1158, %v1161
        %vm1163 = vweird.f32 %v1156
        %vm1164 = vweird.f32 %v1158
        %vm1165 = vmor %vm1163, %vm1164
        %v1166 = vsel %vm1165, %v1158, %v1162
        %v1167 = vand.u32 2147483647, %v1156
        %vm1168 = vcmp.eq.f32.partialorder %v1167, 8.507059e+37
        %v1169 = vand.u32 %v1156, 2147483648
        %v1170 = vor.u32 1.1754944e-38, %v1169
        %v1171 = vsel %vm1168, %v1170, %v1166
        %v1172 = vmul.f32 %v1145, %v1171
        %v1173 = vmul.f32 %v1152, %v1171
        %vm1174 = vcmp.eq.s32.totalorder %v639, 12
        %vm1175 = vcmp.eq.s32.totalorder %v640, 12
        %1177 = vset.pattern.permute.xlu0 12
        %1178 = vperm.xlu0 %1177, %v1144
        %v1179 = vpop.permute.xlu0 %1178
        %v1181 = vperm.slane %v1172, 4
        %v1182 = vmul.f32 %v1179, %v1181
        %v1183 = vmul.f32 %v1156, %v1181
        %v1184 = vsub.f32 %v1144, %v1182
        %v1185 = vsub.f32 %v1145, %v1183
        %v1186 = vsel %vm1174, %v1181, %v1184
        %v1187 = vsel %vm1175, %v1181, %v1185
        %v1188 = vperm.slane %v1173, 4
        %v1189 = vmul.f32 %v1179, %v1188
        %v1190 = vmul.f32 %v1156, %v1188
        %v1191 = vsub.f32 %v1151, %v1189
        %v1192 = vsub.f32 %v1152, %v1190
        %v1193 = vsel %vm1174, %v1188, %v1191
        %v1194 = vsel %vm1175, %v1188, %v1192
        %1196 = vset.pattern.permute.xlu0 13
        %1197 = vperm.xlu0 %1196, %v1187
        %v1198 = vpop.permute.xlu0 %1197
        %v1200 = vrcp.pop %v1198
        %v1201 = vmul.f32 %v1198, %v1200
        %v1202 = vsub.f32 1.0, %v1201
        %v1203 = vmul.f32 %v1200, %v1202
        %v1204 = vadd.f32 %v1200, %v1203
        %vm1205 = vweird.f32 %v1198
        %vm1206 = vweird.f32 %v1200
        %vm1207 = vmor %vm1205, %vm1206
        %v1208 = vsel %vm1207, %v1200, %v1204
        %v1209 = vand.u32 2147483647, %v1198
        %vm1210 = vcmp.eq.f32.partialorder %v1209, 8.507059e+37
        %v1211 = vand.u32 %v1198, 2147483648
        %v1212 = vor.u32 1.1754944e-38, %v1211
        %v1213 = vsel %vm1210, %v1212, %v1208
        %v1214 = vmul.f32 %v1187, %v1213
        %v1215 = vmul.f32 %v1194, %v1213
        %vm1216 = vcmp.eq.s32.totalorder %v639, 13
        %vm1217 = vcmp.eq.s32.totalorder %v640, 13
        %1219 = vset.pattern.permute.xlu0 13
        %1220 = vperm.xlu0 %1219, %v1186
        %v1221 = vpop.permute.xlu0 %1220
        %v1223 = vperm.slane %v1214, 5
        %v1224 = vmul.f32 %v1221, %v1223
        %v1225 = vmul.f32 %v1198, %v1223
        %v1226 = vsub.f32 %v1186, %v1224
        %v1227 = vsub.f32 %v1187, %v1225
        %v1228 = vsel %vm1216, %v1223, %v1226
        %v1229 = vsel %vm1217, %v1223, %v1227
        %v1230 = vperm.slane %v1215, 5
        %v1231 = vmul.f32 %v1221, %v1230
        %v1232 = vmul.f32 %v1198, %v1230
        %v1233 = vsub.f32 %v1193, %v1231
        %v1234 = vsub.f32 %v1194, %v1232
        %v1235 = vsel %vm1216, %v1230, %v1233
        %v1236 = vsel %vm1217, %v1230, %v1234
        %1238 = vset.pattern.permute.xlu0 14
        %1239 = vperm.xlu0 %1238, %v1229
        %v1240 = vpop.permute.xlu0 %1239
        %v1242 = vrcp.pop %v1240
        %v1243 = vmul.f32 %v1240, %v1242
        %v1244 = vsub.f32 1.0, %v1243
        %v1245 = vmul.f32 %v1242, %v1244
        %v1246 = vadd.f32 %v1242, %v1245
        %vm1247 = vweird.f32 %v1240
        %vm1248 = vweird.f32 %v1242
        %vm1249 = vmor %vm1247, %vm1248
        %v1250 = vsel %vm1249, %v1242, %v1246
        %v1251 = vand.u32 2147483647, %v1240
        %vm1252 = vcmp.eq.f32.partialorder %v1251, 8.507059e+37
        %v1253 = vand.u32 %v1240, 2147483648
        %v1254 = vor.u32 1.1754944e-38, %v1253
        %v1255 = vsel %vm1252, %v1254, %v1250
        %v1256 = vmul.f32 %v1229, %v1255
        %v1257 = vmul.f32 %v1236, %v1255
        %vm1258 = vcmp.eq.s32.totalorder %v639, 14
        %vm1259 = vcmp.eq.s32.totalorder %v640, 14
        %1261 = vset.pattern.permute.xlu0 14
        %1262 = vperm.xlu0 %1261, %v1228
        %v1263 = vpop.permute.xlu0 %1262
        %v1265 = vperm.slane %v1256, 6
        %v1266 = vmul.f32 %v1263, %v1265
        %v1267 = vmul.f32 %v1240, %v1265
        %v1268 = vsub.f32 %v1228, %v1266
        %v1269 = vsub.f32 %v1229, %v1267
        %v1270 = vsel %vm1258, %v1265, %v1268
        %v1271 = vsel %vm1259, %v1265, %v1269
        %v1272 = vperm.slane %v1257, 6
        %v1273 = vmul.f32 %v1263, %v1272
        %v1274 = vmul.f32 %v1240, %v1272
        %v1275 = vsub.f32 %v1235, %v1273
        %v1276 = vsub.f32 %v1236, %v1274
        %v1277 = vsel %vm1258, %v1272, %v1275
        %v1278 = vsel %vm1259, %v1272, %v1276
        %1280 = vset.pattern.permute.xlu0 15
        %1281 = vperm.xlu0 %1280, %v1271
        %v1282 = vpop.permute.xlu0 %1281
        %v1284 = vrcp.pop %v1282
        %v1285 = vmul.f32 %v1282, %v1284
        %v1286 = vsub.f32 1.0, %v1285
        %v1287 = vmul.f32 %v1284, %v1286
        %v1288 = vadd.f32 %v1284, %v1287
        %vm1289 = vweird.f32 %v1282
        %vm1290 = vweird.f32 %v1284
        %vm1291 = vmor %vm1289, %vm1290
        %v1292 = vsel %vm1291, %v1284, %v1288
        %v1293 = vand.u32 2147483647, %v1282
        %vm1294 = vcmp.eq.f32.partialorder %v1293, 8.507059e+37
        %v1295 = vand.u32 %v1282, 2147483648
        %v1296 = vor.u32 1.1754944e-38, %v1295
        %v1297 = vsel %vm1294, %v1296, %v1292
        %v1298 = vmul.f32 %v1278, %v1297
        %vm1299 = vcmp.eq.s32.totalorder %v639, 15
        %vm1300 = vcmp.eq.s32.totalorder %v640, 15
        %1302 = vset.pattern.permute.xlu0 15
        %1303 = vperm.xlu0 %1302, %v1270
        %v1304 = vpop.permute.xlu0 %1303
        %v1306 = vperm.slane %v1298, 7
        %v1307 = vmul.f32 %v1304, %v1306
        %v1308 = vmul.f32 %v1282, %v1306
        %v1309 = vsub.f32 %v1277, %v1307
        %v1310 = vsub.f32 %v1278, %v1308
        %v1311 = vsel %vm1299, %v1306, %v1309
        %v1312 = vsel %vm1300, %v1306, %v1310
        %1313 = vst [vmem:[#allocation1] ss:$2 sm:$0xff] %v277
        %v1314 = vld.sshfl [vmem:[#allocation1] sm:$0xff pattern:$0x75316420]
        %v1315 = vld.sshfl [vmem:[#allocation1 + $0x8] sm:$0xff pattern:$0x75316420]
        %1318 = vmatpush.xpose.msra.mxu0 0.0
        %1319 = vmatpush.xpose.msra.mxu0 0.0
        %1320 = vmatpush.xpose.msra.mxu0 0.0
        %1321 = vmatpush.xpose.msra.mxu0 0.0
        %1322 = vmatpush.xpose.msra.mxu0 0.0
        %1323 = vmatpush.xpose.msra.mxu0 0.0
        %1324 = vmatpush.xpose.msra.mxu0 0.0
        %1325 = vmatpush.xpose.msra.mxu0 0.0
        %1326 = vmatpush.xpose.msra.mxu0 0.0
        %1327 = vmatpush.xpose.msra.mxu0 0.0
        %1328 = vmatpush.xpose.msra.mxu0 0.0
        %1329 = vmatpush.xpose.msra.mxu0 0.0
        %1330 = vmatpush.xpose.msra.mxu0 0.0
        %1331 = vmatpush.xpose.msra.mxu0 0.0
        %1332 = vmatpush.xpose.msra.mxu0 %v590
        %1333 = vmatpush.xpose.msra.mxu0 %v574
        %1334 = vmatmul.f32.gmra.mxu0 %v1314
        %v1335 = vpop.f32.mrf.mxu0
        %v1336 = vadd.f32 0.0, %v1335
        %1337 = vdwg.mxu0
        %1338 = vmatpush.xpose.msra.mxu0 0.0
        %1339 = vmatpush.xpose.msra.mxu0 0.0
        %1340 = vmatpush.xpose.msra.mxu0 0.0
        %1341 = vmatpush.xpose.msra.mxu0 0.0
        %1342 = vmatpush.xpose.msra.mxu0 0.0
        %1343 = vmatpush.xpose.msra.mxu0 0.0
        %1344 = vmatpush.xpose.msra.mxu0 0.0
        %1345 = vmatpush.xpose.msra.mxu0 0.0
        %1346 = vmatpush.xpose.msra.mxu0 0.0
        %1347 = vmatpush.xpose.msra.mxu0 0.0
        %1348 = vmatpush.xpose.msra.mxu0 0.0
        %1349 = vmatpush.xpose.msra.mxu0 0.0
        %1350 = vmatpush.xpose.msra.mxu0 0.0
        %1351 = vmatpush.xpose.msra.mxu0 0.0
        %1352 = vmatpush.xpose.msra.mxu0 %v591
        %1353 = vmatpush.xpose.msra.mxu0 %v575
        %1354 = vmatmul.f32.gmra.mxu0 %v1315
        %v1355 = vpop.f32.mrf.mxu0
        %v1356 = vadd.f32 %v1336, %v1355
        %1357 = vdwg.mxu0
        %v1359 = vsel %vm409, %v1356, 0
        %v1362 = vsel %vm409, %v1311, 0
        %v1365 = vsel %vm409, %v1312, 0
        %1367 = vmatpush.xpose.msra.mxu0 0.0
        %1368 = vmatpush.xpose.msra.mxu0 0.0
        %1369 = vmatpush.xpose.msra.mxu0 0.0
        %1370 = vmatpush.xpose.msra.mxu0 0.0
        %1371 = vmatpush.xpose.msra.mxu0 0.0
        %1372 = vmatpush.xpose.msra.mxu0 0.0
        %1373 = vmatpush.xpose.msra.mxu0 0.0
        %1374 = vmatpush.xpose.msra.mxu0 0.0
        %1375 = vmatpush.xpose.msra.mxu0 0.0
        %1376 = vmatpush.xpose.msra.mxu0 0.0
        %1377 = vmatpush.xpose.msra.mxu0 0.0
        %1378 = vmatpush.xpose.msra.mxu0 0.0
        %1379 = vmatpush.xpose.msra.mxu0 0.0
        %1380 = vmatpush.xpose.msra.mxu0 0.0
        %1381 = vmatpush.xpose.msra.mxu0 %v1365
        %1382 = vmatpush.xpose.msra.mxu0 %v1362
        %1383 = vmatmul.f32.gmra.mxu0 %v1359
        %v1384 = vpop.f32.mrf.mxu0
        %v1385 = vadd.f32 0.0, %v1384
        %1386 = vdwg.mxu0
        %v1388 = vsel %vm409, %v1385, 0
        %1390 = vmatpush.msra.mxu0 0.0
        %1391 = vmatpush.msra.mxu0 0.0
        %1392 = vmatpush.msra.mxu0 0.0
        %1393 = vmatpush.msra.mxu0 0.0
        %1394 = vmatpush.msra.mxu0 0.0
        %1395 = vmatpush.msra.mxu0 0.0
        %1396 = vmatpush.msra.mxu0 0.0
        %1397 = vmatpush.msra.mxu0 0.0
        %1398 = vmatpush.msra.mxu0 0.0
        %1399 = vmatpush.msra.mxu0 0.0
        %1400 = vmatpush.msra.mxu0 0.0
        %1401 = vmatpush.msra.mxu0 0.0
        %1402 = vmatpush.msra.mxu0 0.0
        %1403 = vmatpush.msra.mxu0 0.0
        %1404 = vmatpush.msra.mxu0 %v590
        %1405 = vmatpush.msra.mxu0 %v574
        %1406 = vmatmul.f32.gmra.mxu0 %v1388
        %v1407 = vpop.f32.mrf.mxu0
        %v1408 = vadd.f32 0.0, %v1407
        %1409 = vdwg.mxu0
        %1410 = vmatpush.msra.mxu0 0.0
        %1411 = vmatpush.msra.mxu0 0.0
        %1412 = vmatpush.msra.mxu0 0.0
        %1413 = vmatpush.msra.mxu0 0.0
        %1414 = vmatpush.msra.mxu0 0.0
        %1415 = vmatpush.msra.mxu0 0.0
        %1416 = vmatpush.msra.mxu0 0.0
        %1417 = vmatpush.msra.mxu0 0.0
        %1418 = vmatpush.msra.mxu0 0.0
        %1419 = vmatpush.msra.mxu0 0.0
        %1420 = vmatpush.msra.mxu0 0.0
        %1421 = vmatpush.msra.mxu0 0.0
        %1422 = vmatpush.msra.mxu0 0.0
        %1423 = vmatpush.msra.mxu0 0.0
        %1424 = vmatpush.msra.mxu0 %v591
        %1425 = vmatpush.msra.mxu0 %v575
        %1426 = vmatmul.f32.gmra.mxu0 %v1388
        %v1427 = vpop.f32.mrf.mxu0
        %v1428 = vadd.f32 0.0, %v1427
        %1429 = vdwg.mxu0
        %v1432 = vrot.slane %v1428, 4
        %vm1433 = vcmask 1043456
        %v1434 = vsel %vm1433, %v1408, %v1432
        %1436 = vst [vmem:[%s271] sm:$0xff] %v1434
        %s1437 = sand.u32 %s181, 1
        %s1438 = scalar_lea.sflag [#allocation3], %s1437
        %s1439 = sand.u32 %s181, 1
        %s1440 = smul.addr %s1439, 8
        %s1441 = scalar_lea.vmem [#allocation2], %s1440
        // Predicated region
        $region49: #{tpu_custom_call.1} parent=47 // pred_check
          %p1442 = pneg %p191
        $region50: #{tpu_custom_call.1} parent=47 // pred_check_branch
          %1444 = sbr.rel (%p1442) target = $region52
        $region51: #{tpu_custom_call.1} parent=47 // pred_region
          %1446 = vsyncadd %s1438, 0
          %s1447 = smul.addr %s21, 2
          %s1448 = smul.addr %s1447, 4
          %s1449 = scalar_lea.hbm %s7, %s1448
          %s1451 = sshll.u32 %s1441, 4
          %s1452 = int_to_ptr.vmem [resolvable:$true] %s1451
          %s1453 = sshll.u32 %s1449, 4
          %s1454 = int_to_ptr.hbm [resolvable:$true] %s1453
          %1456 = dma.vmem_to_hbm [thread:$0]  %s1452, 128, %s1454, %s1438
        $region52: #{tpu_custom_call.1} parent=47 // pred_fallthru
          _
      $region48: #{tpu_custom_call.1} parent=5 // pred_fallthru
        _
      %p1457 = scmp.le.s32.totalorder 2, %s16
      // Predicated region
      $region53: #{tpu_custom_call.1} parent=5 // pred_check
        %p1458 = pneg %p1457
      $region54: #{tpu_custom_call.1} parent=5 // pred_check_branch
        %1460 = sbr.rel (%p1458) target = $region56
      $region55: #{tpu_custom_call.1} parent=5 // pred_region
        %s1461 = ssub.s32 %s16, 2
        // Predicated region
        $region57: #{tpu_custom_call.1} parent=55 // pred_check
          %p1462 = pneg %p197
        $region58: #{tpu_custom_call.1} parent=55 // pred_check_branch
          %1464 = sbr.rel (%p1462) target = $region60
        $region59: #{tpu_custom_call.1} parent=55 // pred_region
          %s1465 = sand.u32 %s182, 1
          %s1466 = scalar_lea.sflag [#allocation3], %s1465
          %s1467 = sand.u32 %s182, 1
          %s1468 = smul.addr %s1467, 8
          %s1469 = scalar_lea.vmem [#allocation2], %s1468
          %1471 = dma.done %s1466, 128
        $region60: #{tpu_custom_call.1} parent=55 // pred_fallthru
          _
      $region56: #{tpu_custom_call.1} parent=5 // pred_fallthru
        _
    $region6: #{tpu_custom_call.1} parent=1 // loop_footer
      %s20 = sadd.s32 1, %s16
    $region7: #{tpu_custom_call.1} parent=1 // loop_footer_branch
      %15 = sbr.rel target = $region3
    $region8: #{tpu_custom_call.1} parent=1 // loop_exit
      _
    %1472 = vsyncpa [#allocation3], 1
    %s1473 = scalar_lea.sflag [#allocation3], 1
    %1474 = vsyncpa %s1473, 1

</llo_original>
